<compile_context>
chip_gen: v6e
topology: v6e:2x2x1
jax: 0.10.0
libtpu: 0.0.40
codegen_flags: <defaults>
</compile_context>

<pallas_src>
import functools
import math

import jax
import jax.numpy as jnp
from jax import lax
from jax.experimental import pallas as pl
from jax.experimental.pallas import tpu as pltpu


def _attention_pool_kernel(x_ref, pos_s_ref, pos_m_ref, wqkv_ref, bqkv_ref,
                           wout_ref, bout_ref, o_ref,
                           xp_scr, xpm_scr, acc_scr, *, key_chunk):
    """One grid step = (batch block i, attention head h).

    x_ref   : (bt, C, S)   input block, channels-first (native layout).
    pos_s   : (C, S)       spatial part of the positional embedding (f32).
    pos_m   : (1, C)       mean-token part of the positional embedding (f32).
    wqkv    : (1, C, 3d)   this head's qkv projection (columns ordered q|k|v).
    bqkv    : (1, 1, 3d)   this head's qkv bias (f32).
    wout    : (1, d, Cout) this head's slice of the output 1x1 conv.
    bout    : (1, Cout)    output bias (f32).
    o_ref   : (bt, Cout)   written once, at the last head.
    xp_scr  : (bt, S, C)   bf16 scratch, channels-last x+pos (built at h == 0).
    xpm_scr : (bt, 1, C)   bf16 scratch, mean token + pos.
    acc_scr : (bt, Cout)   f32 accumulator over heads.
    """
    h = pl.program_id(1)
    bt, C, S = x_ref.shape
    d3 = wqkv_ref.shape[2]
    d = d3 // 3
    f32 = jnp.float32
    scale = f32(1.0 / math.sqrt(d))

    # ---- per-batch-block preamble (head 0 only): mean token, +pos, on-chip
    # channels-first -> channels-last relayout, accumulator init. ------------
    @pl.when(h == 0)
    def _():
        pos_st = pos_s_ref[...].T                               # (S, C) f32
        pos_m = pos_m_ref[...]                                  # (1, C) f32
        for b in range(bt):                                     # 2-D transposes, XLU
            xbt = x_ref[b].astype(f32).T                        # (S, C)
            xp_scr[b] = (xbt + pos_st).astype(jnp.bfloat16)
            xpm_scr[b] = (jnp.mean(xbt, axis=0, keepdims=True)
                          + pos_m).astype(jnp.bfloat16)         # (1, C)
        acc_scr[...] = jnp.zeros_like(acc_scr)

    # ---- qkv projection for this head: (bt*S, C) @ (C, 3d) in bf16 on the
    # MXU with f32 accumulation; the mean token gets its own tiny row. -------
    wqkv = wqkv_ref[0]                                          # (C, 3d) bf16
    bqkv = bqkv_ref[0]                                          # (1, 3d) f32
    qkv_s = lax.dot_general(
        xp_scr[...].reshape(bt * S, C), wqkv,
        dimension_numbers=(((1,), (0,)), ((), ())),
        preferred_element_type=f32)
    qkv_s = (qkv_s + bqkv).reshape(bt, S, d3)                   # (bt, S, 3d)
    qkv_m = lax.dot_general(
        xpm_scr[...].reshape(bt, C), wqkv,
        dimension_numbers=(((1,), (0,)), ((), ())),
        preferred_element_type=f32) + bqkv                      # (bt, 3d)

    q_s = qkv_s[:, :, :d]                                       # (bt, S, d) f32
    k_s = qkv_s[:, :, d:2 * d]
    v_s = qkv_s[:, :, 2 * d:]
    q_m = qkv_m[:, :d]                                          # (bt, d)
    k_m = qkv_m[:, d:2 * d]
    v_m = qkv_m[:, 2 * d:]
    q_sb = q_s.astype(jnp.bfloat16)                             # MXU inputs
    k_sb = k_s.astype(jnp.bfloat16)

    # ---- softmax statistics.  Softmax runs over the *query* axis s for every
    # key column t; only the s = 0 (mean-token query) row feeds the output, so
    # per key column we need its full column stats but a single weight. ------
    sm = jnp.sum(k_s * q_m[:, None, :], axis=-1) * scale        # (bt, S)  row s=0
    ms = jnp.sum(q_s * k_m[:, None, :], axis=-1) * scale        # (bt, S)  col t=0
    mm = jnp.sum(q_m * k_m, axis=-1, keepdims=True) * scale     # (bt, 1)

    # ---- spatial key columns, processed in chunks so the f32 score tile is
    # bounded to (bt, key_chunk, S) regardless of S. --------------------------
    sa_sp = jnp.zeros((bt, 1, d), f32)
    for t0 in range(0, S, key_chunk):
        t1 = min(S, t0 + key_chunk)
        k_c = k_sb[:, t0:t1, :]                                 # (bt, T, d)
        v_c = v_s[:, t0:t1, :]                                  # (bt, T, d) f32
        sm_c = sm[:, t0:t1]                                     # (bt, T)
        # scores laid out (b, key t, query s) -> all softmax reductions are
        # lane reductions; bf16 MXU matmul, f32 accumulate.
        ss = lax.dot_general(
            k_c, q_sb,
            dimension_numbers=(((2,), (2,)), ((0,), (0,))),
            preferred_element_type=f32) * scale                 # (bt, T, S)
        col_max = jnp.maximum(jnp.max(ss, axis=-1), sm_c)       # (bt, T)
        e0 = jnp.exp(sm_c - col_max)
        denom = e0 + jnp.sum(jnp.exp(ss - col_max[:, :, None]), axis=-1)
        w_c = e0 * pl.reciprocal(denom, approx=True)            # (bt, T)
        # weighted key sum on the MXU (contract T) instead of a sublane
        # VPU/XLU reduction over d-lane-sparse tiles.
        sa_sp = sa_sp + jnp.einsum('bqt,btd->bqd', w_c[:, None, :], v_c,
                                   preferred_element_type=f32)  # (bt, 1, d)
    sa_sp = sa_sp[:, 0, :]                                      # (bt, d)

    # mean-token key column (t = 0):
    max0 = jnp.maximum(jnp.max(ms, axis=-1, keepdims=True), mm)
    e00 = jnp.exp(mm - max0)
    denom0 = e00 + jnp.sum(jnp.exp(ms - max0), axis=-1, keepdims=True)
    w_mn = e00 * pl.reciprocal(denom0, approx=True)             # (bt, 1)

    sa0 = sa_sp + v_m * w_mn                                    # (bt, d)

    # ---- this head's slice of the output 1x1 conv, accumulated in f32. -----
    acc_scr[...] += lax.dot_general(
        sa0, wout_ref[0].astype(f32),
        dimension_numbers=(((1,), (0,)), ((), ())),
        preferred_element_type=f32)

    @pl.when(h == pl.num_programs(1) - 1)
    def _():
        o_ref[...] = acc_scr[...] + bout_ref[...]


def attention_pool(x, pos_emb, w_qkv, b_qkv, w_out, b_out, *, num_heads):
    B, C = x.shape[0], x.shape[1]
    S = math.prod(x.shape[2:])
    Cout = w_out.shape[0]
    H = num_heads
    d = C // H

    # --- wrapper plumbing touches only the (tiny) weights; x itself is only
    # reshaped (free), never transposed / re-written in HBM. -----------------
    x_r = x.reshape(B, C, S)
    pos_s = pos_emb[:, 1:].astype(jnp.float32)                   # (C, S)
    pos_m = jnp.transpose(pos_emb[:, :1]).astype(jnp.float32)    # (1, C)
    # qkv conv rows are ordered (head, {q,k,v}, d); regroup per head so the
    # kernel runs one (C, 3d) matmul per head and slices q/k/v at 0, d, 2d.
    w3 = w_qkv.reshape(H, 3, d, C)
    wqkv_h = jnp.transpose(w3, (0, 3, 1, 2)).reshape(H, C, 3 * d)
    wqkv_h = wqkv_h.astype(jnp.bfloat16)                         # (H, C, 3d)
    bqkv_h = b_qkv.reshape(H, 1, 3 * d).astype(jnp.float32)      # (H, 1, 3d)
    # output conv consumes channels ordered (head, d): per-head (d, Cout).
    wout_h = jnp.transpose(w_out.reshape(Cout, H, d), (1, 2, 0))
    wout_h = wout_h.astype(jnp.bfloat16)                         # (H, d, Cout)
    bout_r = b_out.reshape(1, Cout).astype(jnp.float32)

    # --- tiling: bound the key-chunked score tile, derive the batch block
    # from a per-generation VMEM budget, zero-pad the batch to a multiple. ---
    key_chunk = S if S <= 512 else 512
    try:
        vmem_cap = int(pltpu.get_tpu_info().vmem_capacity_bytes)
    except Exception:
        vmem_cap = 64 * 1024 * 1024
    vmem_limit = max(32 * 1024 * 1024,
                     min(vmem_cap * 3 // 4, 112 * 1024 * 1024))

    x_bytes = x_r.dtype.itemsize
    fixed = (2 * (C * 3 * d * 2 + d * Cout * 2)      # per-head weights (dbl-buffered)
             + 2 * C * S * 4 + 2 * C * 4 + Cout * 8)  # pos + biases
    per_row = (2 * C * S * x_bytes                   # x block, double-buffered
               + S * C * 2                           # xp scratch (bf16)
               + S * 3 * d * 10                      # q/k/v f32 + bf16 copies
               + 2 * key_chunk * S * 4               # score chunk + exp temp
               + 2 * Cout * 4)
    budget = int(vmem_limit * 0.7) - fixed
    bt_cap = max(1, min(budget // max(per_row, 1), 64))
    if B <= bt_cap:
        bt = B                                       # single block == full dim: OK
    else:
        bt = max(8, (bt_cap // 8) * 8)               # 8-aligned output block rows
    b_pad = (-B) % bt
    if b_pad:
        x_r = jnp.pad(x_r, ((0, b_pad), (0, 0), (0, 0)))
    n_i = (B + b_pad) // bt

    kernel = functools.partial(_attention_pool_kernel, key_chunk=key_chunk)

    out = pl.pallas_call(
        kernel,
        out_shape=jax.ShapeDtypeStruct((B + b_pad, Cout), jnp.float32),
        grid_spec=pltpu.PrefetchScalarGridSpec(
            num_scalar_prefetch=0,
            grid=(n_i, H),                            # heads innermost: x block and
            in_specs=[                                # xp scratch stay resident
                pl.BlockSpec((bt, C, S), lambda i, h: (i, 0, 0)),     # x (native)
                pl.BlockSpec((C, S), lambda i, h: (0, 0)),            # pos spatial
                pl.BlockSpec((1, C), lambda i, h: (0, 0)),            # pos mean tok
                pl.BlockSpec((1, C, 3 * d), lambda i, h: (h, 0, 0)),  # qkv W head h
                pl.BlockSpec((1, 1, 3 * d), lambda i, h: (h, 0, 0)),  # qkv b head h
                pl.BlockSpec((1, d, Cout), lambda i, h: (h, 0, 0)),   # out W head h
                pl.BlockSpec((1, Cout), lambda i, h: (0, 0)),         # out bias
            ],
            out_specs=pl.BlockSpec((bt, Cout), lambda i, h: (i, 0)),  # lane-dense
            scratch_shapes=[
                pltpu.VMEM((bt, S, C), jnp.bfloat16),   # xp, channels-last
                pltpu.VMEM((bt, 1, C), jnp.bfloat16),   # mean token + pos
                pltpu.VMEM((bt, Cout), jnp.float32),    # accumulator over heads
            ],
        ),
        compiler_params=pltpu.CompilerParams(
            # batch axis parallel (megacore / v7x dual-TC sharding), head axis
            # carries the accumulator -> arbitrary.
            dimension_semantics=("parallel", "arbitrary"),
            vmem_limit_bytes=vmem_limit),
    )(x_r, pos_s, pos_m, wqkv_h, bqkv_h, wout_h, bout_r)
    return out[:B] if b_pad else out


def attention_pool_ref(x, pos_emb, w_qkv, b_qkv, w_out, b_out, num_heads):
    """Pure-JAX reference matching the PyTorch module semantics (f32)."""
    B, C = x.shape[0], x.shape[1]
    S = math.prod(x.shape[2:])
    xf = x.reshape(B, C, S)
    xf = jnp.concatenate([xf.mean(-1, keepdims=True), xf], axis=-1)
    xf = xf + pos_emb[None]
    qkv = jnp.einsum('oc,bcl->bol', w_qkv, xf) + b_qkv[None, :, None]
    H = num_heads
    d = C // H
    qkv = qkv.reshape(B * H, 3 * d, S + 1)
    q, k, v = qkv[:, :d], qkv[:, d:2 * d], qkv[:, 2 * d:]
    attn = jnp.einsum('bcs,bct->bst', q, k) * (1.0 / math.sqrt(d))
    attn = jax.nn.softmax(attn, axis=1)              # softmax over s (dim=1)
    sa = jnp.einsum('bst,bct->bcs', attn, v).reshape(B, C, S + 1)
    h = jnp.einsum('oc,bcl->bol', w_out, sa) + b_out[None, :, None]
    return h[:, :, 0]


if __name__ == "__main__":
    key = jax.random.PRNGKey(0)
    B = 2
    emb_channels = 8
    spatial_dim = 4
    dimensions = 2
    attention_ch_per_head = 4
    num_heads = emb_channels // attention_ch_per_head     # 2 heads
    out_channels = emb_channels                            # module default
    S = spatial_dim ** dimensions                           # 16
    L = S + 1                                                # 17

    k0, k1, k2, k3, k4, k5 = jax.random.split(key, 6)
    x = jax.random.normal(k0, (B, emb_channels, spatial_dim, spatial_dim),
                          jnp.float32)
    pos_emb = jax.random.normal(k1, (emb_channels, L), jnp.float32) \
        / jnp.sqrt(jnp.float32(emb_channels))
    w_qkv = jax.random.normal(k2, (3 * emb_channels, emb_channels),
                              jnp.float32) * 0.1
    b_qkv = jax.random.normal(k3, (3 * emb_channels,), jnp.float32) * 0.1
    w_out = jax.random.normal(k4, (out_channels, emb_channels),
                              jnp.float32) * 0.1
    b_out = jax.random.normal(k5, (out_channels,), jnp.float32) * 0.1

    # Feed identical bf16-rounded operands to the kernel and the reference so
    # the comparison only measures in-kernel numerics (bf16 matmuls, approx
    # reciprocal), not input rounding.
    x_q = x.astype(jnp.bfloat16).astype(jnp.float32)
    w_qkv_q = w_qkv.astype(jnp.bfloat16).astype(jnp.float32)
    w_out_q = w_out.astype(jnp.bfloat16).astype(jnp.float32)

    out = attention_pool(x_q, pos_emb, w_qkv_q, b_qkv, w_out_q, b_out,
                         num_heads=num_heads)
    out = jax.block_until_ready(out)

    ref = attention_pool_ref(x_q, pos_emb, w_qkv_q, b_qkv, w_out_q, b_out,
                             num_heads)

    assert out.shape == (B, out_channels)
    err = jnp.max(jnp.abs(out - ref))
    assert jnp.allclose(out, ref, atol=2e-2, rtol=2e-2), f"mismatch: {err}"
    print("KERNEL_OK")
</pallas_src>

<mosaic_0001>
module attributes {stable_mosaic.version = 11 : i64} {
  func.func @_attention_pool_kernel(%arg0: i32, %arg1: i32, %arg2: memref<2x8x16xf32, #tpu.memory_space<vmem>>, %arg3: memref<8x16xf32, #tpu.memory_space<vmem>>, %arg4: memref<1x8xf32, #tpu.memory_space<vmem>>, %arg5: memref<1x8x12xbf16, #tpu.memory_space<vmem>>, %arg6: memref<1x1x12xf32, #tpu.memory_space<vmem>>, %arg7: memref<1x4x8xbf16, #tpu.memory_space<vmem>>, %arg8: memref<1x8xf32, #tpu.memory_space<vmem>>, %arg9: memref<2x8xf32, #tpu.memory_space<vmem>>, %arg10: memref<2x16x8xbf16, #tpu.memory_space<vmem>>, %arg11: memref<2x1x8xbf16, #tpu.memory_space<vmem>>, %arg12: memref<2x8xf32, #tpu.memory_space<vmem>>) attributes {dimension_semantics = [#tpu.dimension_semantics<parallel>, #tpu.dimension_semantics<arbitrary>], iteration_bounds = array<i64: 1, 2>, scalar_prefetch = 0 : i64, scratch_operands = 3 : i64, tpu.core_type = #tpu.core_type<tc>, window_params = [{transform_indices = @transform_0, window_bounds = array<i64: 2, 8, 16>}, {pipeline_mode = #tpu.pipeline_mode<synchronous>, transform_indices = @transform_1, window_bounds = array<i64: 8, 16>}, {pipeline_mode = #tpu.pipeline_mode<synchronous>, transform_indices = @transform_2, window_bounds = array<i64: 1, 8>}, {transform_indices = @transform_3, window_bounds = array<i64: 1, 8, 12>}, {transform_indices = @transform_4, window_bounds = array<i64: 1, 1, 12>}, {transform_indices = @transform_5, window_bounds = array<i64: 1, 4, 8>}, {pipeline_mode = #tpu.pipeline_mode<synchronous>, transform_indices = @transform_6, window_bounds = array<i64: 1, 8>}, {transform_indices = @transform_7, window_bounds = array<i64: 2, 8>}]} {
    %c0_i32 = arith.constant 0 : i32
    %0 = arith.cmpi eq, %arg1, %c0_i32 : i32
    %1 = arith.extui %0 : i1 to i32
    %c0_i32_0 = arith.constant 0 : i32
    %2 = arith.cmpi ne, %1, %c0_i32_0 : i32
    scf.if %2 {
      %c0_36 = arith.constant 0 : index
      %c0_37 = arith.constant 0 : index
      %89 = vector.load %arg3[%c0_36, %c0_37] : memref<8x16xf32, #tpu.memory_space<vmem>>, vector<8x16xf32>
      %90 = tpu.transpose %89, [1, 0] : vector<8x16xf32> -> vector<16x8xf32>
      %c0_38 = arith.constant 0 : index
      %c0_39 = arith.constant 0 : index
      %91 = vector.load %arg4[%c0_38, %c0_39] : memref<1x8xf32, #tpu.memory_space<vmem>>, vector<1x8xf32>
      %c0_40 = arith.constant 0 : index
      %c0_41 = arith.constant 0 : index
      %c0_42 = arith.constant 0 : index
      %92 = vector.load %arg2[%c0_40, %c0_41, %c0_42] : memref<2x8x16xf32, #tpu.memory_space<vmem>>, vector<1x8x16xf32>
      %93 = vector.shape_cast %92 : vector<1x8x16xf32> to vector<8x16xf32>
      %94 = tpu.transpose %93, [1, 0] : vector<8x16xf32> -> vector<16x8xf32>
      %95 = arith.addf %94, %90 : vector<16x8xf32>
      %96 = arith.truncf %95 : vector<16x8xf32> to vector<16x8xbf16>
      %c0_43 = arith.constant 0 : index
      %c0_44 = arith.constant 0 : index
      %c0_45 = arith.constant 0 : index
      %97 = vector.load %arg10[%c0_43, %c0_44, %c0_45] : memref<2x16x8xbf16, #tpu.memory_space<vmem>>, vector<1x16x8xbf16>
      %98 = vector.shape_cast %97 : vector<1x16x8xbf16> to vector<16x8xbf16>
      %99 = vector.shape_cast %96 : vector<16x8xbf16> to vector<1x16x8xbf16>
      tpu.vector_store %arg10[%c0_43, %c0_44, %c0_45], %99 {strides = array<i32>} : memref<2x16x8xbf16, #tpu.memory_space<vmem>>, vector<1x16x8xbf16>,
      %cst_46 = arith.constant dense<0.000000e+00> : vector<8xf32>
      %100 = vector.multi_reduction <add>, %94, %cst_46 [0] : vector<16x8xf32> to vector<8xf32>
      %101 = vector.shape_cast %100 : vector<8xf32> to vector<1x8xf32>
      %cst_47 = arith.constant 1.600000e+01 : f32
      %102 = vector.broadcast %cst_47 : f32 to vector<1x8xf32>
      %103 = arith.divf %101, %102 : vector<1x8xf32>
      %104 = arith.addf %103, %91 : vector<1x8xf32>
      %105 = arith.truncf %104 : vector<1x8xf32> to vector<1x8xbf16>
      %c0_48 = arith.constant 0 : index
      %c0_49 = arith.constant 0 : index
      %c0_50 = arith.constant 0 : index
      %106 = vector.load %arg11[%c0_48, %c0_49, %c0_50] : memref<2x1x8xbf16, #tpu.memory_space<vmem>>, vector<1x1x8xbf16>
      %107 = vector.shape_cast %106 : vector<1x1x8xbf16> to vector<1x8xbf16>
      %108 = vector.shape_cast %105 : vector<1x8xbf16> to vector<1x1x8xbf16>
      tpu.vector_store %arg11[%c0_48, %c0_49, %c0_50], %108 {strides = array<i32>} : memref<2x1x8xbf16, #tpu.memory_space<vmem>>, vector<1x1x8xbf16>,
      %c1 = arith.constant 1 : index
      %c0_51 = arith.constant 0 : index
      %c0_52 = arith.constant 0 : index
      %109 = vector.load %arg2[%c1, %c0_51, %c0_52] : memref<2x8x16xf32, #tpu.memory_space<vmem>>, vector<1x8x16xf32>
      %110 = vector.shape_cast %109 : vector<1x8x16xf32> to vector<8x16xf32>
      %111 = tpu.transpose %110, [1, 0] : vector<8x16xf32> -> vector<16x8xf32>
      %112 = arith.addf %111, %90 : vector<16x8xf32>
      %113 = arith.truncf %112 : vector<16x8xf32> to vector<16x8xbf16>
      %c1_53 = arith.constant 1 : index
      %c0_54 = arith.constant 0 : index
      %c0_55 = arith.constant 0 : index
      %114 = vector.load %arg10[%c1_53, %c0_54, %c0_55] : memref<2x16x8xbf16, #tpu.memory_space<vmem>>, vector<1x16x8xbf16>
      %115 = vector.shape_cast %114 : vector<1x16x8xbf16> to vector<16x8xbf16>
      %116 = vector.shape_cast %113 : vector<16x8xbf16> to vector<1x16x8xbf16>
      tpu.vector_store %arg10[%c1_53, %c0_54, %c0_55], %116 {strides = array<i32>} : memref<2x16x8xbf16, #tpu.memory_space<vmem>>, vector<1x16x8xbf16>,
      %cst_56 = arith.constant dense<0.000000e+00> : vector<8xf32>
      %117 = vector.multi_reduction <add>, %111, %cst_56 [0] : vector<16x8xf32> to vector<8xf32>
      %118 = vector.shape_cast %117 : vector<8xf32> to vector<1x8xf32>
      %cst_57 = arith.constant 1.600000e+01 : f32
      %119 = vector.broadcast %cst_57 : f32 to vector<1x8xf32>
      %120 = arith.divf %118, %119 : vector<1x8xf32>
      %121 = arith.addf %120, %91 : vector<1x8xf32>
      %122 = arith.truncf %121 : vector<1x8xf32> to vector<1x8xbf16>
      %c1_58 = arith.constant 1 : index
      %c0_59 = arith.constant 0 : index
      %c0_60 = arith.constant 0 : index
      %123 = vector.load %arg11[%c1_58, %c0_59, %c0_60] : memref<2x1x8xbf16, #tpu.memory_space<vmem>>, vector<1x1x8xbf16>
      %124 = vector.shape_cast %123 : vector<1x1x8xbf16> to vector<1x8xbf16>
      %125 = vector.shape_cast %122 : vector<1x8xbf16> to vector<1x1x8xbf16>
      tpu.vector_store %arg11[%c1_58, %c0_59, %c0_60], %125 {strides = array<i32>} : memref<2x1x8xbf16, #tpu.memory_space<vmem>>, vector<1x1x8xbf16>,
      %cst_61 = arith.constant 0.000000e+00 : f32
      %126 = vector.broadcast %cst_61 : f32 to vector<2x8xf32>
      %c0_62 = arith.constant 0 : index
      %c0_63 = arith.constant 0 : index
      %127 = vector.load %arg12[%c0_62, %c0_63] : memref<2x8xf32, #tpu.memory_space<vmem>>, vector<2x8xf32>
      tpu.vector_store %arg12[%c0_62, %c0_63], %126 {strides = array<i32>} : memref<2x8xf32, #tpu.memory_space<vmem>>, vector<2x8xf32>,
    } else {
    }
    %c0 = arith.constant 0 : index
    %c0_1 = arith.constant 0 : index
    %c0_2 = arith.constant 0 : index
    %3 = vector.load %arg5[%c0, %c0_1, %c0_2] : memref<1x8x12xbf16, #tpu.memory_space<vmem>>, vector<1x8x12xbf16>
    %4 = vector.shape_cast %3 : vector<1x8x12xbf16> to vector<8x12xbf16>
    %c0_3 = arith.constant 0 : index
    %c0_4 = arith.constant 0 : index
    %c0_5 = arith.constant 0 : index
    %5 = vector.load %arg6[%c0_3, %c0_4, %c0_5] : memref<1x1x12xf32, #tpu.memory_space<vmem>>, vector<1x1x12xf32>
    %6 = vector.shape_cast %5 : vector<1x1x12xf32> to vector<1x12xf32>
    %c0_6 = arith.constant 0 : index
    %c0_7 = arith.constant 0 : index
    %c0_8 = arith.constant 0 : index
    %7 = vector.load %arg10[%c0_6, %c0_7, %c0_8] : memref<2x16x8xbf16, #tpu.memory_space<vmem>>, vector<2x16x8xbf16>
    %8 = vector.shape_cast %7 : vector<2x16x8xbf16> to vector<32x8xbf16>
    %cst = arith.constant dense<0.000000e+00> : vector<32x12xf32>
    %9 = tpu.matmul %8, %4, %cst {dimension_numbers = #tpu.dot_dimension_numbers<[1], [0], [0], [1], [0, 0, 1, 1], [], []>} : vector<32x8xbf16>, vector<8x12xbf16>, vector<32x12xf32> -> vector<32x12xf32>
    %10 = vector.broadcast %6 : vector<1x12xf32> to vector<32x12xf32>
    %11 = arith.addf %9, %10 : vector<32x12xf32>
    %12 = vector.shape_cast %11 : vector<32x12xf32> to vector<2x16x12xf32>
    %c0_9 = arith.constant 0 : index
    %c0_10 = arith.constant 0 : index
    %c0_11 = arith.constant 0 : index
    %13 = vector.load %arg11[%c0_9, %c0_10, %c0_11] : memref<2x1x8xbf16, #tpu.memory_space<vmem>>, vector<2x1x8xbf16>
    %14 = vector.shape_cast %13 : vector<2x1x8xbf16> to vector<2x8xbf16>
    %cst_12 = arith.constant dense<0.000000e+00> : vector<2x12xf32>
    %15 = tpu.matmul %14, %4, %cst_12 {dimension_numbers = #tpu.dot_dimension_numbers<[1], [0], [0], [1], [0, 0, 1, 1], [], []>} : vector<2x8xbf16>, vector<8x12xbf16>, vector<2x12xf32> -> vector<2x12xf32>
    %16 = vector.broadcast %6 : vector<1x12xf32> to vector<2x12xf32>
    %17 = arith.addf %15, %16 : vector<2x12xf32>
    %18 = vector.extract_strided_slice %12 {offsets = [0, 0, 0], sizes = [2, 16, 4], strides = [1, 1, 1]} : vector<2x16x12xf32> to vector<2x16x4xf32>
    %19 = vector.extract_strided_slice %12 {offsets = [0, 0, 4], sizes = [2, 16, 4], strides = [1, 1, 1]} : vector<2x16x12xf32> to vector<2x16x4xf32>
    %20 = vector.extract_strided_slice %12 {offsets = [0, 0, 8], sizes = [2, 16, 4], strides = [1, 1, 1]} : vector<2x16x12xf32> to vector<2x16x4xf32>
    %21 = vector.extract_strided_slice %17 {offsets = [0, 0], sizes = [2, 4], strides = [1, 1]} : vector<2x12xf32> to vector<2x4xf32>
    %22 = vector.extract_strided_slice %17 {offsets = [0, 4], sizes = [2, 4], strides = [1, 1]} : vector<2x12xf32> to vector<2x4xf32>
    %23 = vector.extract_strided_slice %17 {offsets = [0, 8], sizes = [2, 4], strides = [1, 1]} : vector<2x12xf32> to vector<2x4xf32>
    %24 = arith.truncf %18 : vector<2x16x4xf32> to vector<2x16x4xbf16>
    %25 = arith.truncf %19 : vector<2x16x4xf32> to vector<2x16x4xbf16>
    %26 = vector.shape_cast %21 : vector<2x4xf32> to vector<2x1x4xf32>
    %27 = vector.broadcast %26 : vector<2x1x4xf32> to vector<2x16x4xf32>
    %28 = arith.mulf %19, %27 : vector<2x16x4xf32>
    %cst_13 = arith.constant dense<0.000000e+00> : vector<2x16xf32>
    %29 = vector.multi_reduction <add>, %28, %cst_13 [2] : vector<2x16x4xf32> to vector<2x16xf32>
    %cst_14 = arith.constant 5.000000e-01 : f32
    %30 = vector.broadcast %cst_14 : f32 to vector<2x16xf32>
    %31 = arith.mulf %29, %30 : vector<2x16xf32>
    %32 = vector.shape_cast %22 : vector<2x4xf32> to vector<2x1x4xf32>
    %33 = vector.broadcast %32 : vector<2x1x4xf32> to vector<2x16x4xf32>
    %34 = arith.mulf %18, %33 : vector<2x16x4xf32>
    %cst_15 = arith.constant dense<0.000000e+00> : vector<2x16xf32>
    %35 = vector.multi_reduction <add>, %34, %cst_15 [2] : vector<2x16x4xf32> to vector<2x16xf32>
    %cst_16 = arith.constant 5.000000e-01 : f32
    %36 = vector.broadcast %cst_16 : f32 to vector<2x16xf32>
    %37 = arith.mulf %35, %36 : vector<2x16xf32>
    %38 = arith.mulf %21, %22 : vector<2x4xf32>
    %cst_17 = arith.constant dense<0.000000e+00> : vector<2xf32>
    %39 = vector.multi_reduction <add>, %38, %cst_17 [1] : vector<2x4xf32> to vector<2xf32>
    %40 = vector.shape_cast %39 : vector<2xf32> to vector<2x1xf32>
    %cst_18 = arith.constant 5.000000e-01 : f32
    %41 = vector.broadcast %cst_18 : f32 to vector<2x1xf32>
    %42 = arith.mulf %40, %41 : vector<2x1xf32>
    %cst_19 = arith.constant 0.000000e+00 : f32
    %43 = vector.broadcast %cst_19 : f32 to vector<2x1x4xf32>
    %cst_20 = arith.constant dense<0.000000e+00> : vector<2x16x16xf32>
    %44 = tpu.matmul %25, %24, %cst_20 {dimension_numbers = #tpu.dot_dimension_numbers<[2], [2], [1], [1], [0, 0, 0, 1, 1, 1], [0], [0]>} : vector<2x16x4xbf16>, vector<2x16x4xbf16>, vector<2x16x16xf32> -> vector<2x16x16xf32>
    %cst_21 = arith.constant 5.000000e-01 : f32
    %45 = vector.broadcast %cst_21 : f32 to vector<2x16x16xf32>
    %46 = arith.mulf %44, %45 : vector<2x16x16xf32>
    %cst_22 = arith.constant dense<0xFF800000> : vector<2x16xf32>
    %47 = vector.multi_reduction <maximumf>, %46, %cst_22 [2] : vector<2x16x16xf32> to vector<2x16xf32>
    %48 = arith.maximumf %47, %31 : vector<2x16xf32>
    %49 = arith.subf %31, %48 : vector<2x16xf32>
    %50 = math.exp %49 : vector<2x16xf32>
    %51 = vector.shape_cast %48 : vector<2x16xf32> to vector<2x16x1xf32>
    %52 = vector.broadcast %51 : vector<2x16x1xf32> to vector<2x16x16xf32>
    %53 = arith.subf %46, %52 : vector<2x16x16xf32>
    %54 = math.exp %53 : vector<2x16x16xf32>
    %cst_23 = arith.constant dense<0.000000e+00> : vector<2x16xf32>
    %55 = vector.multi_reduction <add>, %54, %cst_23 [2] : vector<2x16x16xf32> to vector<2x16xf32>
    %56 = arith.addf %50, %55 : vector<2x16xf32>
    %57 = tpu.reciprocal %56 {approx = true} : vector<2x16xf32> -> vector<2x16xf32>
    %58 = arith.mulf %50, %57 : vector<2x16xf32>
    %59 = vector.shape_cast %58 : vector<2x16xf32> to vector<2x1x16xf32>
    "tpu.trace_start"() <{level = 10 : i32, message = "bqt,btd->bqd"}> : () -> ()
    %cst_24 = arith.constant dense<0.000000e+00> : vector<2x1x4xf32>
    %60 = tpu.matmul %59, %20, %cst_24 {dimension_numbers = #tpu.dot_dimension_numbers<[2], [1], [1], [2], [0, 0, 0, 1, 1, 2], [0], [0]>} : vector<2x1x16xf32>, vector<2x16x4xf32>, vector<2x1x4xf32> -> vector<2x1x4xf32>
    "tpu.trace_stop"() : () -> ()
    %61 = arith.addf %43, %60 : vector<2x1x4xf32>
    %62 = vector.shape_cast %61 : vector<2x1x4xf32> to vector<2x4xf32>
    %cst_25 = arith.constant dense<0xFF800000> : vector<2xf32>
    %63 = vector.multi_reduction <maximumf>, %37, %cst_25 [1] : vector<2x16xf32> to vector<2xf32>
    %64 = vector.shape_cast %63 : vector<2xf32> to vector<2x1xf32>
    %65 = arith.maximumf %64, %42 : vector<2x1xf32>
    %66 = arith.subf %42, %65 : vector<2x1xf32>
    %67 = math.exp %66 : vector<2x1xf32>
    %68 = vector.broadcast %65 : vector<2x1xf32> to vector<2x16xf32>
    %69 = arith.subf %37, %68 : vector<2x16xf32>
    %70 = math.exp %69 : vector<2x16xf32>
    %cst_26 = arith.constant dense<0.000000e+00> : vector<2xf32>
    %71 = vector.multi_reduction <add>, %70, %cst_26 [1] : vector<2x16xf32> to vector<2xf32>
    %72 = vector.shape_cast %71 : vector<2xf32> to vector<2x1xf32>
    %73 = arith.addf %67, %72 : vector<2x1xf32>
    %74 = tpu.reciprocal %73 {approx = true} : vector<2x1xf32> -> vector<2x1xf32>
    %75 = arith.mulf %67, %74 : vector<2x1xf32>
    %76 = vector.broadcast %75 : vector<2x1xf32> to vector<2x4xf32>
    %77 = arith.mulf %23, %76 : vector<2x4xf32>
    %78 = arith.addf %62, %77 : vector<2x4xf32>
    %c0_27 = arith.constant 0 : index
    %c0_28 = arith.constant 0 : index
    %79 = vector.load %arg12[%c0_27, %c0_28] : memref<2x8xf32, #tpu.memory_space<vmem>>, vector<2x8xf32>
    %c0_29 = arith.constant 0 : index
    %c0_30 = arith.constant 0 : index
    %c0_31 = arith.constant 0 : index
    %80 = vector.load %arg7[%c0_29, %c0_30, %c0_31] : memref<1x4x8xbf16, #tpu.memory_space<vmem>>, vector<1x4x8xbf16>
    %81 = vector.shape_cast %80 : vector<1x4x8xbf16> to vector<4x8xbf16>
    %82 = arith.extf %81 : vector<4x8xbf16> to vector<4x8xf32>
    %cst_32 = arith.constant dense<0.000000e+00> : vector<2x8xf32>
    %83 = tpu.matmul %78, %82, %cst_32 {dimension_numbers = #tpu.dot_dimension_numbers<[1], [0], [0], [1], [0, 0, 1, 1], [], []>} : vector<2x4xf32>, vector<4x8xf32>, vector<2x8xf32> -> vector<2x8xf32>
    %84 = arith.addf %79, %83 : vector<2x8xf32>
    %c0_33 = arith.constant 0 : index
    %c0_34 = arith.constant 0 : index
    %85 = vector.load %arg12[%c0_33, %c0_34] : memref<2x8xf32, #tpu.memory_space<vmem>>, vector<2x8xf32>
    tpu.vector_store %arg12[%c0_33, %c0_34], %84 {strides = array<i32>} : memref<2x8xf32, #tpu.memory_space<vmem>>, vector<2x8xf32>,
    %c1_i32 = arith.constant 1 : i32
    %86 = arith.cmpi eq, %arg1, %c1_i32 : i32
    %87 = arith.extui %86 : i1 to i32
    %c0_i32_35 = arith.constant 0 : i32
    %88 = arith.cmpi ne, %87, %c0_i32_35 : i32
    scf.if %88 {
      %c0_36 = arith.constant 0 : index
      %c0_37 = arith.constant 0 : index
      %89 = vector.load %arg12[%c0_36, %c0_37] : memref<2x8xf32, #tpu.memory_space<vmem>>, vector<2x8xf32>
      %c0_38 = arith.constant 0 : index
      %c0_39 = arith.constant 0 : index
      %90 = vector.load %arg8[%c0_38, %c0_39] : memref<1x8xf32, #tpu.memory_space<vmem>>, vector<1x8xf32>
      %91 = vector.broadcast %90 : vector<1x8xf32> to vector<2x8xf32>
      %92 = arith.addf %89, %91 : vector<2x8xf32>
      %c0_40 = arith.constant 0 : index
      %c0_41 = arith.constant 0 : index
      %93 = vector.load %arg9[%c0_40, %c0_41] : memref<2x8xf32, #tpu.memory_space<vmem>>, vector<2x8xf32>
      tpu.vector_store %arg9[%c0_40, %c0_41], %92 {strides = array<i32>} : memref<2x8xf32, #tpu.memory_space<vmem>>, vector<2x8xf32>,
    } else {
    }
    return
  }
  func.func @transform_0(%arg0: i32, %arg1: i32) -> (i32, i32, i32) {
    %c0_i32 = arith.constant 0 : i32
    %c0_i32_0 = arith.constant 0 : i32
    %c0_i32_1 = arith.constant 0 : i32
    return %arg0, %c0_i32, %c0_i32_0 : i32, i32, i32
  }
  func.func @transform_1(%arg0: i32, %arg1: i32) -> (i32, i32) {
    %c0_i32 = arith.constant 0 : i32
    %c0_i32_0 = arith.constant 0 : i32
    %c0_i32_1 = arith.constant 0 : i32
    return %c0_i32, %c0_i32_0 : i32, i32
  }
  func.func @transform_2(%arg0: i32, %arg1: i32) -> (i32, i32) {
    %c0_i32 = arith.constant 0 : i32
    %c0_i32_0 = arith.constant 0 : i32
    %c0_i32_1 = arith.constant 0 : i32
    return %c0_i32, %c0_i32_0 : i32, i32
  }
  func.func @transform_3(%arg0: i32, %arg1: i32) -> (i32, i32, i32) {
    %c0_i32 = arith.constant 0 : i32
    %c0_i32_0 = arith.constant 0 : i32
    %c0_i32_1 = arith.constant 0 : i32
    return %arg1, %c0_i32, %c0_i32_0 : i32, i32, i32
  }
  func.func @transform_4(%arg0: i32, %arg1: i32) -> (i32, i32, i32) {
    %c0_i32 = arith.constant 0 : i32
    %c0_i32_0 = arith.constant 0 : i32
    %c0_i32_1 = arith.constant 0 : i32
    return %arg1, %c0_i32, %c0_i32_0 : i32, i32, i32
  }
  func.func @transform_5(%arg0: i32, %arg1: i32) -> (i32, i32, i32) {
    %c0_i32 = arith.constant 0 : i32
    %c0_i32_0 = arith.constant 0 : i32
    %c0_i32_1 = arith.constant 0 : i32
    return %arg1, %c0_i32, %c0_i32_0 : i32, i32, i32
  }
  func.func @transform_6(%arg0: i32, %arg1: i32) -> (i32, i32) {
    %c0_i32 = arith.constant 0 : i32
    %c0_i32_0 = arith.constant 0 : i32
    %c0_i32_1 = arith.constant 0 : i32
    return %c0_i32, %c0_i32_0 : i32, i32
  }
  func.func @transform_7(%arg0: i32, %arg1: i32) -> (i32, i32) {
    %c0_i32 = arith.constant 0 : i32
    %c0_i32_0 = arith.constant 0 : i32
    return %arg0, %c0_i32 : i32, i32
  }
}

</mosaic_0001>

<llo_original>
// kernel: tpu_custom_call.1
$region0: #{tpu_custom_call.1}
  #allocation0 [shape = 'u32[]', space=smem, size = 0x4, offset = 0x4, fixed_abs, tag = 'smem constant byte address 0x4 - core index']
  #allocation1 [shape = 'u32[144,128]{1,0:T(1,128)}', space=vmem, size = 0x12000, scoped, tag = 'internal scratch']
  #allocation2 [shape = 'bf16[2,16,8]{2,1,0:T(8,128)(2,1)}', space=vmem, size = 0x2000, scoped, tag = 'scratch operand']
  #allocation3 [shape = 'bf16[2,1,8]{2,1,0:T(2,128)(2,1)}', space=vmem, size = 0x400, scoped, tag = 'scratch operand']
  #allocation4 [shape = 'f32[2,8]{1,0:T(2,128)}', space=vmem, size = 0x400, scoped, tag = 'scratch operand']
  %s0 = inlined_call_operand.hbm [shape: f32[2,8,16], index: 0, kind: input, shape index: {}]
  %s1 = inlined_call_operand.hbm [shape: f32[8,16], index: 1, kind: input, shape index: {}]
  %s2 = inlined_call_operand.vmem [shape: f32[1,8], index: 2, kind: input, shape index: {}]
  %s3 = inlined_call_operand.hbm [shape: bf16[2,8,12], index: 3, kind: input, shape index: {}]
  %s4 = inlined_call_operand.vmem [shape: f32[2,1,12], index: 4, kind: input, shape index: {}]
  %s5 = inlined_call_operand.vmem [shape: bf16[2,4,8], index: 5, kind: input, shape index: {}]
  %s6 = inlined_call_operand.vmem [shape: f32[1,8], index: 6, kind: input, shape index: {}]
  %s7 = inlined_call_operand.hbm [shape: f32[2,8], index: 7, kind: output, shape index: {}]
  %s8 = sld [smem:[#allocation0]]
  $region81: #{tpu_custom_call.1} parent=0
    _
  %s10 = ssub.s32 1, %s8
  %s11 = scalar_select 0, %s10, %s8
  $region1: #{tpu_custom_call.1} parent=0
    #allocation5 [shape = 'u8[8192]{0}', space=vmem, size = 0x2000, scoped, tag = 'input window, operand 0, single buffered']
    #allocation6 [shape = 's32[2]{0}', space=sflag, size = 0x8, scoped, tag = 'scoped memory for tpu_custom_call.1']
    #allocation7 [shape = 's32[2]{0}', space=sflag, size = 0x8, scoped, tag = 'scoped memory for tpu_custom_call.1']
    #allocation8 [shape = 'u8[4096]{0}', space=vmem, size = 0x1000, scoped, tag = 'input window, operand 1, single buffered']
    #allocation9 [shape = 's32[1]{0}', space=sflag, size = 0x4, scoped, tag = 'scoped memory for tpu_custom_call.1']
    #allocation10 [shape = 'u8[4096]{0}', space=vmem, size = 0x1000, scoped, tag = 'input window, operand 3']
    #allocation11 [shape = 'u8[1024]{0}', space=vmem, size = 0x400, scoped, tag = 'output window, operand 0, single buffered']
    %12 = vsyncpa [#allocation6], 0
    %13 = vsyncpa [#allocation9], 0
    %14 = vsyncpa [#allocation7], 0
    loop: start=0, step=1, limit=4
    $region2: #{tpu_custom_call.1} parent=1 // loop_pre_header
      _
    $region3: #{tpu_custom_call.1} parent=1 // loop_header
      %s16 = sphi 0, %s20
      %p17 = scmp.ge.s32.totalorder %s16, 4
      %s23 = sphi 0, %s35
      %s24 = sphi 0, %s31
      %s25 = sphi 0, %s23
      %s26 = sphi 0, %s24
      %s27 = sphi 0, %s25
      %s28 = sphi 0, %s26
      %s38 = sphi 0, %s40
      %s41 = sphi 0, %s38
      %s42 = sphi 0, %s41
      %s58 = sphi 0, %s42
      %s62 = sphi 0, %s62
      %s64 = sphi 0, %s62
      %s65 = sphi 0, %s64
      %s79 = sphi 0, %s65
      %s83 = sphi 0, %s83
      %s85 = sphi 0, %s83
      %s86 = sphi 0, %s85
      %s100 = sphi 0, %s86
      %s106 = sphi 0, %s108
      %s109 = sphi 0, %s106
      %s110 = sphi 0, %s109
      %s126 = sphi 0, %s110
      %s132 = sphi 0, %s134
      %s135 = sphi 0, %s132
      %s136 = sphi 0, %s135
      %s152 = sphi 0, %s136
      %s158 = sphi 0, %s160
      %s161 = sphi 0, %s158
      %s162 = sphi 0, %s161
      %s178 = sphi 0, %s162
      %s182 = sphi 0, %s182
      %s184 = sphi 0, %s182
      %s185 = sphi 0, %s184
      %s199 = sphi 0, %s185
      %s205 = sphi 0, %s207
      %s208 = sphi 0, %s205
      %s209 = sphi 0, %s208
      %s225 = sphi 0, %s209
    $region4: #{tpu_custom_call.1} parent=1 // loop_header_branch
      %19 = sbr.rel (%p17) target = $region8
    $region5: #{tpu_custom_call.1} parent=1 // loop_body
      %s21 = ssub.s32 %s16, 1
      %s22 = ssub.s32 %s16, 2
      %s29 = sadd.s32 1, %s24
      %p30 = scmp.ge.s32.totalorder %s29, 2
      %s31 = scalar_select %p30, 0, %s29
      %s32 = sadd.s32 1, %s23
      %s33 = scalar_select %p30, %s32, %s23
      %p34 = scmp.ge.s32.totalorder %s33, 1
      %s35 = scalar_select %p34, 0, %s33
      %s36 = ssub.s32 %s23, %s35
      %p37 = scmp.eq.s32.totalorder %s36, 0
      %s39 = sadd.s32 %s38, 1
      %s40 = scalar_select %p37, %s38, %s39
      %p43 = pneg %p37
      %p44 = scmp.eq.s32.totalorder %s16, 1
      %p45 = por %p43, %p44
      %p46 = scmp.ne.s32.totalorder %s38, %s41
      %p47 = scmp.eq.s32.totalorder %s16, 0
      %p48 = por %p46, %p47
      %p49 = scmp.ne.s32.totalorder %s38, %s41
      %p50 = scmp.eq.s32.totalorder %s21, 1
      %p51 = por %p49, %p50
      %p52 = scmp.ne.s32.totalorder %s41, %s42
      %p53 = scmp.eq.s32.totalorder %s21, 0
      %p54 = por %p52, %p53
      %p55 = scmp.ne.s32.totalorder %s41, %s42
      %p56 = scmp.eq.s32.totalorder %s22, 1
      %p57 = por %p55, %p56
      %p59 = scmp.ne.s32.totalorder %s42, %s58
      %p60 = scmp.eq.s32.totalorder %s22, 0
      %p61 = por %p59, %p60
      %s63 = sadd.s32 %s62, 1
      %p66 = scmp.eq.s32.totalorder %s16, 1
      %p67 = scmp.ne.s32.totalorder %s62, %s64
      %p68 = scmp.eq.s32.totalorder %s16, 0
      %p69 = por %p67, %p68
      %p70 = scmp.ne.s32.totalorder %s62, %s64
      %p71 = scmp.eq.s32.totalorder %s21, 1
      %p72 = por %p70, %p71
      %p73 = scmp.ne.s32.totalorder %s64, %s65
      %p74 = scmp.eq.s32.totalorder %s21, 0
      %p75 = por %p73, %p74
      %p76 = scmp.ne.s32.totalorder %s64, %s65
      %p77 = scmp.eq.s32.totalorder %s22, 1
      %p78 = por %p76, %p77
      %p80 = scmp.ne.s32.totalorder %s65, %s79
      %p81 = scmp.eq.s32.totalorder %s22, 0
      %p82 = por %p80, %p81
      %s84 = sadd.s32 %s83, 1
      %p87 = scmp.eq.s32.totalorder %s16, 1
      %p88 = scmp.ne.s32.totalorder %s83, %s85
      %p89 = scmp.eq.s32.totalorder %s16, 0
      %p90 = por %p88, %p89
      %p91 = scmp.ne.s32.totalorder %s83, %s85
      %p92 = scmp.eq.s32.totalorder %s21, 1
      %p93 = por %p91, %p92
      %p94 = scmp.ne.s32.totalorder %s85, %s86
      %p95 = scmp.eq.s32.totalorder %s21, 0
      %p96 = por %p94, %p95
      %p97 = scmp.ne.s32.totalorder %s85, %s86
      %p98 = scmp.eq.s32.totalorder %s22, 1
      %p99 = por %p97, %p98
      %p101 = scmp.ne.s32.totalorder %s86, %s100
      %p102 = scmp.eq.s32.totalorder %s22, 0
      %p103 = por %p101, %p102
      %s104 = ssub.s32 %s24, %s31
      %p105 = scmp.eq.s32.totalorder %s104, 0
      %s107 = sadd.s32 %s106, 1
      %s108 = scalar_select %p105, %s106, %s107
      %p111 = pneg %p105
      %p112 = scmp.eq.s32.totalorder %s16, 1
      %p113 = por %p111, %p112
      %p114 = scmp.ne.s32.totalorder %s106, %s109
      %p115 = scmp.eq.s32.totalorder %s16, 0
      %p116 = por %p114, %p115
      %p117 = scmp.ne.s32.totalorder %s106, %s109
      %p118 = scmp.eq.s32.totalorder %s21, 1
      %p119 = por %p117, %p118
      %p120 = scmp.ne.s32.totalorder %s109, %s110
      %p121 = scmp.eq.s32.totalorder %s21, 0
      %p122 = por %p120, %p121
      %p123 = scmp.ne.s32.totalorder %s109, %s110
      %p124 = scmp.eq.s32.totalorder %s22, 1
      %p125 = por %p123, %p124
      %p127 = scmp.ne.s32.totalorder %s110, %s126
      %p128 = scmp.eq.s32.totalorder %s22, 0
      %p129 = por %p127, %p128
      %s130 = ssub.s32 %s24, %s31
      %p131 = scmp.eq.s32.totalorder %s130, 0
      %s133 = sadd.s32 %s132, 1
      %s134 = scalar_select %p131, %s132, %s133
      %p137 = pneg %p131
      %p138 = scmp.eq.s32.totalorder %s16, 1
      %p139 = por %p137, %p138
      %p140 = scmp.ne.s32.totalorder %s132, %s135
      %p141 = scmp.eq.s32.totalorder %s16, 0
      %p142 = por %p140, %p141
      %p143 = scmp.ne.s32.totalorder %s132, %s135
      %p144 = scmp.eq.s32.totalorder %s21, 1
      %p145 = por %p143, %p144
      %p146 = scmp.ne.s32.totalorder %s135, %s136
      %p147 = scmp.eq.s32.totalorder %s21, 0
      %p148 = por %p146, %p147
      %p149 = scmp.ne.s32.totalorder %s135, %s136
      %p150 = scmp.eq.s32.totalorder %s22, 1
      %p151 = por %p149, %p150
      %p153 = scmp.ne.s32.totalorder %s136, %s152
      %p154 = scmp.eq.s32.totalorder %s22, 0
      %p155 = por %p153, %p154
      %s156 = ssub.s32 %s24, %s31
      %p157 = scmp.eq.s32.totalorder %s156, 0
      %s159 = sadd.s32 %s158, 1
      %s160 = scalar_select %p157, %s158, %s159
      %p163 = pneg %p157
      %p164 = scmp.eq.s32.totalorder %s16, 1
      %p165 = por %p163, %p164
      %p166 = scmp.ne.s32.totalorder %s158, %s161
      %p167 = scmp.eq.s32.totalorder %s16, 0
      %p168 = por %p166, %p167
      %p169 = scmp.ne.s32.totalorder %s158, %s161
      %p170 = scmp.eq.s32.totalorder %s21, 1
      %p171 = por %p169, %p170
      %p172 = scmp.ne.s32.totalorder %s161, %s162
      %p173 = scmp.eq.s32.totalorder %s21, 0
      %p174 = por %p172, %p173
      %p175 = scmp.ne.s32.totalorder %s161, %s162
      %p176 = scmp.eq.s32.totalorder %s22, 1
      %p177 = por %p175, %p176
      %p179 = scmp.ne.s32.totalorder %s162, %s178
      %p180 = scmp.eq.s32.totalorder %s22, 0
      %p181 = por %p179, %p180
      %s183 = sadd.s32 %s182, 1
      %p186 = scmp.eq.s32.totalorder %s16, 1
      %p187 = scmp.ne.s32.totalorder %s182, %s184
      %p188 = scmp.eq.s32.totalorder %s16, 0
      %p189 = por %p187, %p188
      %p190 = scmp.ne.s32.totalorder %s182, %s184
      %p191 = scmp.eq.s32.totalorder %s21, 1
      %p192 = por %p190, %p191
      %p193 = scmp.ne.s32.totalorder %s184, %s185
      %p194 = scmp.eq.s32.totalorder %s21, 0
      %p195 = por %p193, %p194
      %p196 = scmp.ne.s32.totalorder %s184, %s185
      %p197 = scmp.eq.s32.totalorder %s22, 1
      %p198 = por %p196, %p197
      %p200 = scmp.ne.s32.totalorder %s185, %s199
      %p201 = scmp.eq.s32.totalorder %s22, 0
      %p202 = por %p200, %p201
      %s203 = ssub.s32 %s23, %s35
      %p204 = scmp.eq.s32.totalorder %s203, 0
      %s206 = sadd.s32 %s205, 1
      %s207 = scalar_select %p204, %s205, %s206
      %p210 = pneg %p204
      %p211 = scmp.eq.s32.totalorder %s16, 1
      %p212 = por %p210, %p211
      %p213 = scmp.ne.s32.totalorder %s205, %s208
      %p214 = scmp.eq.s32.totalorder %s16, 0
      %p215 = por %p213, %p214
      %p216 = scmp.ne.s32.totalorder %s205, %s208
      %p217 = scmp.eq.s32.totalorder %s21, 1
      %p218 = por %p216, %p217
      %p219 = scmp.ne.s32.totalorder %s208, %s209
      %p220 = scmp.eq.s32.totalorder %s21, 0
      %p221 = por %p219, %p220
      %p222 = scmp.ne.s32.totalorder %s208, %s209
      %p223 = scmp.eq.s32.totalorder %s22, 1
      %p224 = por %p222, %p223
      %p226 = scmp.ne.s32.totalorder %s209, %s225
      %p227 = scmp.eq.s32.totalorder %s22, 0
      %p228 = por %p226, %p227
      %p229 = scmp.le.s32.totalorder 1, %s16
      %p230 = scmp.lt.s32.totalorder %s16, 3
      %p231 = pnand %p229, %p230
      %p232 = pneg %p231
      // Predicated region
      $region9: #{tpu_custom_call.1} parent=5 // pred_check
        _
      $region10: #{tpu_custom_call.1} parent=5 // pred_check_branch
        %234 = sbr.rel (%p231) target = $region12
      $region11: #{tpu_custom_call.1} parent=5 // pred_region
        %s235 = ssub.s32 %s16, 1
        // Predicated region
        $region13: #{tpu_custom_call.1} parent=11 // pred_check
          %p236 = pneg %p54
        $region14: #{tpu_custom_call.1} parent=11 // pred_check_branch
          %238 = sbr.rel (%p236) target = $region16
        $region15: #{tpu_custom_call.1} parent=11 // pred_region
          %s239 = smul.u32 2, %s25
          %s241 = ssub.s32 256, 256
          %242 = vsyncadd [#allocation6], %s241
          %s243 = smul.addr %s239, 128
          %s244 = scalar_lea.hbm %s0, %s243
          %s245 = sshll.u32 [#allocation5], 4
          %s246 = int_to_ptr.vmem [resolvable:$true] %s245
          %251 = dma.hbm_to_vmem [thread:$0]  %s244, 256, %s246, [#allocation6], 128, 128, 8
        $region16: #{tpu_custom_call.1} parent=11 // pred_fallthru
          _
        // Predicated region
        $region17: #{tpu_custom_call.1} parent=11 // pred_check
          %p252 = pneg %p75
        $region18: #{tpu_custom_call.1} parent=11 // pred_check_branch
          %254 = sbr.rel (%p252) target = $region20
        $region19: #{tpu_custom_call.1} parent=11 // pred_region
          %s256 = ssub.s32 128, 128
          %257 = vsyncadd [#allocation9], %s256
          %s259 = sshll.u32 [#allocation8], 4
          %s260 = int_to_ptr.vmem [resolvable:$true] %s259
          %262 = dma.hbm_to_vmem [thread:$0]  %s1, 128, %s260, [#allocation9]
        $region20: #{tpu_custom_call.1} parent=11 // pred_fallthru
          _
        // Predicated region
        $region21: #{tpu_custom_call.1} parent=11 // pred_check
          %p263 = pneg %p96
        $region22: #{tpu_custom_call.1} parent=11 // pred_check_branch
          %265 = sbr.rel (%p263) target = $region24
        $region23: #{tpu_custom_call.1} parent=11 // pred_region
          _
        $region24: #{tpu_custom_call.1} parent=11 // pred_fallthru
          _
        // Predicated region
        $region25: #{tpu_custom_call.1} parent=11 // pred_check
          %p266 = pneg %p195
        $region26: #{tpu_custom_call.1} parent=11 // pred_check_branch
          %268 = sbr.rel (%p266) target = $region28
        $region27: #{tpu_custom_call.1} parent=11 // pred_region
          _
        $region28: #{tpu_custom_call.1} parent=11 // pred_fallthru
          _
      $region12: #{tpu_custom_call.1} parent=5 // pred_fallthru
        _
      %p269 = scmp.lt.s32.totalorder %s16, 2
      // Predicated region
      $region29: #{tpu_custom_call.1} parent=5 // pred_check
        %p270 = pneg %p269
      $region30: #{tpu_custom_call.1} parent=5 // pred_check_branch
        %272 = sbr.rel (%p270) target = $region32
      $region31: #{tpu_custom_call.1} parent=5 // pred_region
        // Predicated region
        $region33: #{tpu_custom_call.1} parent=31 // pred_check
          %p273 = pneg %p116
        $region34: #{tpu_custom_call.1} parent=31 // pred_check_branch
          %275 = sbr.rel (%p273) target = $region36
        $region35: #{tpu_custom_call.1} parent=31 // pred_region
          %s276 = sand.u32 %s16, 1
          %s277 = scalar_lea.sflag [#allocation6], %s276
          %s278 = sand.u32 %s106, 1
          %s279 = smul.addr %s278, 4
          %s280 = scalar_lea.vmem [#allocation10], %s279
          %s282 = ssub.s32 64, 64
          %283 = vsyncadd %s277, %s282
          %s284 = smul.addr %s24, 64
          %s285 = scalar_lea.hbm %s3, %s284
          %s287 = sshll.u32 %s280, 4
          %s288 = int_to_ptr.vmem [resolvable:$true] %s287
          %290 = dma.hbm_to_vmem [thread:$0]  %s285, 64, %s288, %s277
        $region36: #{tpu_custom_call.1} parent=31 // pred_fallthru
          _
        // Predicated region
        $region37: #{tpu_custom_call.1} parent=31 // pred_check
          %p291 = pneg %p142
        $region38: #{tpu_custom_call.1} parent=31 // pred_check_branch
          %293 = sbr.rel (%p291) target = $region40
        $region39: #{tpu_custom_call.1} parent=31 // pred_region
          %p294 = scmp.lt.s32.totalorder %s24, 1
          %s295 = scalar_select %p294, %s24, 1
          %s296 = scalar_lea.vmem %s4, %s295
        $region40: #{tpu_custom_call.1} parent=31 // pred_fallthru
          _
        // Predicated region
        $region41: #{tpu_custom_call.1} parent=31 // pred_check
          %p297 = pneg %p168
        $region42: #{tpu_custom_call.1} parent=31 // pred_check_branch
          %299 = sbr.rel (%p297) target = $region44
        $region43: #{tpu_custom_call.1} parent=31 // pred_region
          %p300 = scmp.lt.s32.totalorder %s24, 1
          %s301 = scalar_select %p300, %s24, 1
          %s302 = smul.addr %s301, 2
          %s303 = scalar_lea.vmem %s5, %s302
        $region44: #{tpu_custom_call.1} parent=31 // pred_fallthru
          _
      $region32: #{tpu_custom_call.1} parent=5 // pred_fallthru
        _
      %p304 = scmp.le.s32.totalorder 1, %s16
      %p305 = scmp.lt.s32.totalorder %s16, 3
      %p306 = pnand %p304, %p305
      %p307 = pneg %p306
      // Predicated region
      $region45: #{tpu_custom_call.1} parent=5 // pred_check
        _
      $region46: #{tpu_custom_call.1} parent=5 // pred_check_branch
        %309 = sbr.rel (%p306) target = $region48
      $region47: #{tpu_custom_call.1} parent=5 // pred_region
        %s310 = ssub.s32 %s16, 1
        // Predicated region
        $region49: #{tpu_custom_call.1} parent=47 // pred_check
          %p311 = pneg %p54
        $region50: #{tpu_custom_call.1} parent=47 // pred_check_branch
          %313 = sbr.rel (%p311) target = $region52
        $region51: #{tpu_custom_call.1} parent=47 // pred_region
          %314 = dma.done [#allocation6], 256
        $region52: #{tpu_custom_call.1} parent=47 // pred_fallthru
          _
        // Predicated region
        $region53: #{tpu_custom_call.1} parent=47 // pred_check
          %p315 = pneg %p75
        $region54: #{tpu_custom_call.1} parent=47 // pred_check_branch
          %317 = sbr.rel (%p315) target = $region56
        $region55: #{tpu_custom_call.1} parent=47 // pred_region
          %318 = dma.done [#allocation9], 128
        $region56: #{tpu_custom_call.1} parent=47 // pred_fallthru
          _
        %s319 = sand.u32 %s21, 1
        %s320 = scalar_lea.sflag [#allocation6], %s319
        %s321 = sand.u32 %s109, 1
        %s322 = smul.addr %s321, 4
        %s323 = scalar_lea.vmem [#allocation10], %s322
        // Predicated region
        $region57: #{tpu_custom_call.1} parent=47 // pred_check
          %p324 = pneg %p122
        $region58: #{tpu_custom_call.1} parent=47 // pred_check_branch
          %326 = sbr.rel (%p324) target = $region60
        $region59: #{tpu_custom_call.1} parent=47 // pred_region
          %327 = dma.done %s320, 64
        $region60: #{tpu_custom_call.1} parent=47 // pred_fallthru
          _
        %p328 = pneg %p54
        %p329 = pneg %p51
        %p330 = pneg %p75
        %p331 = pneg %p72
        %p332 = pneg %p96
        %p333 = pneg %p93
        %s334 = sand.u32 %s21, 1
        %s335 = scalar_lea.sflag [#allocation6], %s334
        %s336 = sand.u32 %s109, 1
        %s337 = smul.addr %s336, 4
        %s338 = scalar_lea.vmem [#allocation10], %s337
        %p339 = pneg %p122
        %p340 = pneg %p119
        %p341 = scmp.lt.s32.totalorder %s26, 1
        %s342 = scalar_select %p341, %s26, 1
        %s343 = scalar_lea.vmem %s4, %s342
        %p344 = pneg %p148
        %p345 = pneg %p145
        %p346 = scmp.lt.s32.totalorder %s26, 1
        %s347 = scalar_select %p346, %s26, 1
        %s348 = smul.addr %s347, 2
        %s349 = scalar_lea.vmem %s5, %s348
        %p350 = pneg %p174
        %p351 = pneg %p171
        %p352 = pneg %p195
        %p353 = pneg %p192
        %p354 = pneg %p221
        %p355 = pneg %p218
        %s356 = smul.u32 2, %s25
        %p357 = scmp.lt.s32.totalorder %s26, 1
        %s358 = scalar_select %p357, %s26, 1
        %s359 = scalar_lea.vmem %s4, %s358
        %p360 = scmp.lt.s32.totalorder %s26, 1
        %s361 = scalar_select %p360, %s26, 1
        %s362 = smul.addr %s361, 2
        %s363 = scalar_lea.vmem %s5, %s362
        %p365 = scmp.eq.s32.totalorder %s26, 0
        // Predicated region
        $region61: #{tpu_custom_call.1} parent=47 // pred_check
          %p366 = pneg %p365
        $region62: #{tpu_custom_call.1} parent=47 // pred_check_branch
          %368 = sbr.rel (%p366) target = $region64
        $region63: #{tpu_custom_call.1} parent=47 // pred_region
          %v369 = vld [vmem:[#allocation8] sm:$0xff]
          %370 = vxpose.xlu0.b32.start [1/16] %v369, 128
          %371 = vxpose.xlu0.b32.cont [2/16] 0.0, 128
          %372 = vxpose.xlu0.b32.cont [3/16] 0.0, 128
          %373 = vxpose.xlu0.b32.cont [4/16] 0.0, 128
          %374 = vxpose.xlu0.b32.cont [5/16] 0.0, 128
          %375 = vxpose.xlu0.b32.cont [6/16] 0.0, 128
          %376 = vxpose.xlu0.b32.cont [7/16] 0.0, 128
          %377 = vxpose.xlu0.b32.cont [8/16] 0.0, 128
          %378 = vxpose.xlu0.b32.cont [9/16] 0.0, 128
          %379 = vxpose.xlu0.b32.cont [10/16] 0.0, 128
          %380 = vxpose.xlu0.b32.cont [11/16] 0.0, 128
          %381 = vxpose.xlu0.b32.cont [12/16] 0.0, 128
          %382 = vxpose.xlu0.b32.cont [13/16] 0.0, 128
          %383 = vxpose.xlu0.b32.cont [14/16] 0.0, 128
          %384 = vxpose.xlu0.b32.cont [15/16] 0.0, 128
          %385 = vxpose.xlu0.b32.end [16/16] 0.0, 128
          %v386 = vpop.trf.xlu0
          %v387 = vpop.trf.xlu0
          %v388 = vpop.trf.xlu0
          %v389 = vpop.trf.xlu0
          %v390 = vpop.trf.xlu0
          %v391 = vpop.trf.xlu0
          %v392 = vpop.trf.xlu0
          %v393 = vpop.trf.xlu0
          %v394 = vpop.trf.xlu0
          %v395 = vpop.trf.xlu0
          %v396 = vpop.trf.xlu0
          %v397 = vpop.trf.xlu0
          %v398 = vpop.trf.xlu0
          %v399 = vpop.trf.xlu0
          %v400 = vpop.trf.xlu0
          %v401 = vpop.trf.xlu0
          %v402 = vld [vmem:[%s2] sm:$0x1]
          %v403 = vld [vmem:[#allocation5] sm:$0xff]
          %404 = vxpose.xlu0.b32.start [1/16] %v403, 128
          %405 = vxpose.xlu0.b32.cont [2/16] 0.0, 128
          %406 = vxpose.xlu0.b32.cont [3/16] 0.0, 128
          %407 = vxpose.xlu0.b32.cont [4/16] 0.0, 128
          %408 = vxpose.xlu0.b32.cont [5/16] 0.0, 128
          %409 = vxpose.xlu0.b32.cont [6/16] 0.0, 128
          %410 = vxpose.xlu0.b32.cont [7/16] 0.0, 128
          %411 = vxpose.xlu0.b32.cont [8/16] 0.0, 128
          %412 = vxpose.xlu0.b32.cont [9/16] 0.0, 128
          %413 = vxpose.xlu0.b32.cont [10/16] 0.0, 128
          %414 = vxpose.xlu0.b32.cont [11/16] 0.0, 128
          %415 = vxpose.xlu0.b32.cont [12/16] 0.0, 128
          %416 = vxpose.xlu0.b32.cont [13/16] 0.0, 128
          %417 = vxpose.xlu0.b32.cont [14/16] 0.0, 128
          %418 = vxpose.xlu0.b32.cont [15/16] 0.0, 128
          %419 = vxpose.xlu0.b32.end [16/16] 0.0, 128
          %v420 = vpop.trf.xlu0
          %v421 = vpop.trf.xlu0
          %v422 = vpop.trf.xlu0
          %v423 = vpop.trf.xlu0
          %v424 = vpop.trf.xlu0
          %v425 = vpop.trf.xlu0
          %v426 = vpop.trf.xlu0
          %v427 = vpop.trf.xlu0
          %v428 = vpop.trf.xlu0
          %v429 = vpop.trf.xlu0
          %v430 = vpop.trf.xlu0
          %v431 = vpop.trf.xlu0
          %v432 = vpop.trf.xlu0
          %v433 = vpop.trf.xlu0
          %v434 = vpop.trf.xlu0
          %v435 = vpop.trf.xlu0
          %v436 = vadd.f32 %v420, %v386
          %v437 = vadd.f32 %v421, %v387
          %v438 = vpack.c.bf16 %v437, %v436
          %v440 = vunpack.c.l.b16 %v438
          %v441 = vunpack.c.h.b16 %v438
          %v442 = vpack.c.b16 %v440, %v440
          %v443 = vpack.c.b16 %v441, %v441
          %vm446 = vcmask 60416
          %447 = vst.msk [vmem:[#allocation2] sm:$0xf] %vm446, %v442
          %448 = vst.msk [vmem:[#allocation2 + $0x4] sm:$0xf] %vm446, %v443
          %vm449 = vcmask 64512
          %v450 = vsel %vm449, %v420, 0.0
          %v451 = vsel %vm449, %v421, 0.0
          %v452 = vadd.f32 %v450, %v451
          %v453 = vrot.slane %v452, 4
          %v454 = vadd.f32 %v452, %v453
          %v455 = vrot.slane %v454, 2
          %v456 = vadd.f32 %v454, %v455
          %v457 = vrot.slane %v456, 1
          %v458 = vadd.f32 %v456, %v457
          %v459 = vrcp.pop 16.0
          %v460 = vmul.f32 %v458, %v459
          %v461 = vadd.f32 %v460, %v402
          %v462 = vpack.c.bf16 %v461, %v461
          %vm463 = vcmask 57344
          %vm464 = vsmask.f32 256
          %vm465 = vmand %vm463, %vm464
          %v466 = vld [vmem:[#allocation3] sm:$0x1]
          %v467 = vsel %vm465, %v462, %v466
          %468 = vst [vmem:[#allocation3] sm:$0x1] %v467
          %s469 = scalar_lea.vmem [#allocation5], 8
          %v470 = vld [vmem:[%s469] sm:$0xff]
          %471 = vxpose.xlu0.b32.start [1/16] %v470, 128
          %472 = vxpose.xlu0.b32.cont [2/16] 0.0, 128
          %473 = vxpose.xlu0.b32.cont [3/16] 0.0, 128
          %474 = vxpose.xlu0.b32.cont [4/16] 0.0, 128
          %475 = vxpose.xlu0.b32.cont [5/16] 0.0, 128
          %476 = vxpose.xlu0.b32.cont [6/16] 0.0, 128
          %477 = vxpose.xlu0.b32.cont [7/16] 0.0, 128
          %478 = vxpose.xlu0.b32.cont [8/16] 0.0, 128
          %479 = vxpose.xlu0.b32.cont [9/16] 0.0, 128
          %480 = vxpose.xlu0.b32.cont [10/16] 0.0, 128
          %481 = vxpose.xlu0.b32.cont [11/16] 0.0, 128
          %482 = vxpose.xlu0.b32.cont [12/16] 0.0, 128
          %483 = vxpose.xlu0.b32.cont [13/16] 0.0, 128
          %484 = vxpose.xlu0.b32.cont [14/16] 0.0, 128
          %485 = vxpose.xlu0.b32.cont [15/16] 0.0, 128
          %486 = vxpose.xlu0.b32.end [16/16] 0.0, 128
          %v487 = vpop.trf.xlu0
          %v488 = vpop.trf.xlu0
          %v489 = vpop.trf.xlu0
          %v490 = vpop.trf.xlu0
          %v491 = vpop.trf.xlu0
          %v492 = vpop.trf.xlu0
          %v493 = vpop.trf.xlu0
          %v494 = vpop.trf.xlu0
          %v495 = vpop.trf.xlu0
          %v496 = vpop.trf.xlu0
          %v497 = vpop.trf.xlu0
          %v498 = vpop.trf.xlu0
          %v499 = vpop.trf.xlu0
          %v500 = vpop.trf.xlu0
          %v501 = vpop.trf.xlu0
          %v502 = vpop.trf.xlu0
          %v503 = vadd.f32 %v487, %v386
          %v504 = vadd.f32 %v488, %v387
          %v505 = vpack.c.bf16 %v504, %v503
          %v507 = vunpack.c.l.b16 %v505
          %v508 = vunpack.c.h.b16 %v505
          %v509 = vpack.c.b16 %v507, %v507
          %v510 = vpack.c.b16 %v508, %v508
          %s513 = scalar_lea.vmem [#allocation2], 8
          %514 = vst.msk [vmem:[%s513] sm:$0xf] %vm446, %v509
          %515 = vst.msk [vmem:[%s513 + $0x4] sm:$0xf] %vm446, %v510
          %v516 = vsel %vm449, %v487, 0.0
          %v517 = vsel %vm449, %v488, 0.0
          %v518 = vadd.f32 %v516, %v517
          %v519 = vrot.slane %v518, 4
          %v520 = vadd.f32 %v518, %v519
          %v521 = vrot.slane %v520, 2
          %v522 = vadd.f32 %v520, %v521
          %v523 = vrot.slane %v522, 1
          %v524 = vadd.f32 %v522, %v523
          %v525 = vmul.f32 %v524, %v459
          %v526 = vadd.f32 %v525, %v402
          %v527 = vpack.c.bf16 %v526, %v526
          %s528 = scalar_lea.vmem [#allocation3], 1
          %v529 = vld [vmem:[%s528] sm:$0x1]
          %v530 = vsel %vm465, %v527, %v529
          %531 = vst [vmem:[%s528] sm:$0x1] %v530
          %vm532 = vcmask 58368
          %533 = vst.msk [vmem:[#allocation4] sm:$0x3] %vm532, 0.0
        $region64: #{tpu_custom_call.1} parent=47 // pred_fallthru
          _
        %v534 = vld [vmem:[%s323] sm:$0xf]
        %v535 = vld [vmem:[%s359] sm:$0x1]
        %v536 = vld [vmem:[#allocation2] sm:$0xf]
        %v537 = vld [vmem:[#allocation2 + $0x4] sm:$0xf]
        %v538 = vld [vmem:[#allocation2 + $0x8] sm:$0xf]
        %v539 = vld [vmem:[#allocation2 + $0xc] sm:$0xf]
        %v541 = vlaneseq
        %v542 = vshrl.u32 %v541, 7
        %v543 = vsub.s32 0, %v542
        %v544 = vrot.slane %v535, %v543
        %v550 = vunpack.c.l.b16 %v536
        %v551 = vunpack.c.l.b16 %v537
        %v552 = vunpack.c.l.b16 %v538
        %v553 = vunpack.c.l.b16 %v539
        %v554 = vpack.c.b16 %v551, %v550
        %v555 = vpack.c.b16 %v553, %v552
        %vm556 = vcmask 64512
        %v558 = vsel %vm556, %v554, 0
        %v561 = vsel %vm556, %v555, 0
        %vm563 = vcmask 1043456
        %v565 = vsel %vm563, %v534, 0
        %567 = vmatprep.subr.bf16.mxu0 0
        %568 = vmatpush1.bf16.msra.mxu0 0
        %569 = vmatprep.subr.bf16.mxu0 0
        %570 = vmatpush1.bf16.msra.mxu0 0
        %571 = vmatprep.subr.bf16.mxu0 0
        %572 = vmatpush1.bf16.msra.mxu0 0
        %573 = vmatprep.subr.bf16.mxu0 0
        %574 = vmatpush1.bf16.msra.mxu0 0
        %575 = vmatprep.subr.bf16.mxu0 0
        %576 = vmatpush1.bf16.msra.mxu0 0
        %577 = vmatprep.subr.bf16.mxu0 0
        %578 = vmatpush1.bf16.msra.mxu0 0
        %579 = vmatprep.subr.bf16.mxu0 0
        %580 = vmatpush1.bf16.msra.mxu0 0
        %581 = vmatprep.subr.bf16.mxu0 0
        %582 = vmatpush1.bf16.msra.mxu0 %v565
        %583 = vmatprep.subr.bf16.mxu0 0
        %584 = vmatpush2.bf16.msra.mxu0 0
        %585 = vmatprep.subr.bf16.mxu0 0
        %586 = vmatpush2.bf16.msra.mxu0 0
        %587 = vmatprep.subr.bf16.mxu0 0
        %588 = vmatpush2.bf16.msra.mxu0 0
        %589 = vmatprep.subr.bf16.mxu0 0
        %590 = vmatpush2.bf16.msra.mxu0 0
        %591 = vmatprep.subr.bf16.mxu0 0
        %592 = vmatpush2.bf16.msra.mxu0 0
        %593 = vmatprep.subr.bf16.mxu0 0
        %594 = vmatpush2.bf16.msra.mxu0 0
        %595 = vmatprep.subr.bf16.mxu0 0
        %596 = vmatpush2.bf16.msra.mxu0 0
        %597 = vmatprep.subr.bf16.mxu0 0
        %598 = vmatpush2.bf16.msra.mxu0 0
        %599 = vmatprep.mubr.bf16.mxu0 0
        %600 = vmatmul.mubr.bf16.gmra.mxu0 %v558
        %v601 = vpop.f32.mrf.mxu0
        %v602 = vadd.f32 %v544, %v601
        %v603 = vpop.f32.mrf.mxu0
        %v604 = vpop.f32.mrf.mxu0
        %v605 = vadd.f32 %v544, %v604
        %v606 = vpop.f32.mrf.mxu0
        %607 = vmatprep.mubr.bf16.mxu0 0
        %608 = vmatmul.mubr.bf16.gmra.mxu0 %v561
        %v609 = vpop.f32.mrf.mxu0
        %v610 = vadd.f32 %v544, %v609
        %v611 = vpop.f32.mrf.mxu0
        %v612 = vpop.f32.mrf.mxu0
        %v613 = vadd.f32 %v544, %v612
        %v614 = vpop.f32.mrf.mxu0
        %615 = vdwg.mxu0
        %v616 = vld [vmem:[#allocation3] sm:$0x1]
        %v617 = vld [vmem:[#allocation3 + $0x1] sm:$0x1]
        %v621 = vunpack.c.l.s4 1966171168
        %v622 = vunpack.c.0.s8 %v621
        %v623 = vlaneseq
        %v624 = vshrl.u32 %v623, 7
        %v625 = vsub.s32 %v622, %v624
        %v626 = vrot.slane %v616, %v625
        %v628 = vunpack.c.l.s4 1966171168
        %v629 = vunpack.c.0.s8 %v628
        %v630 = vlaneseq
        %v631 = vshrl.u32 %v630, 7
        %v632 = vsub.s32 %v629, %v631
        %v633 = vrot.slane %v626, %v632
        %v635 = vunpack.c.l.s4 1966171168
        %v636 = vunpack.c.0.s8 %v635
        %v637 = vlaneseq
        %v638 = vshrl.u32 %v637, 7
        %v639 = vsub.s32 %v636, %v638
        %v640 = vrot.slane %v617, %v639
        %v642 = vunpack.c.l.s4 1966171168
        %v643 = vunpack.c.0.s8 %v642
        %v644 = vlaneseq
        %v645 = vshrl.u32 %v644, 7
        %v646 = vsub.s32 %v643, %v645
        %v647 = vrot.slane %v640, %v646
        %v648 = vunpack.c.l.b16 %v633
        %v649 = vunpack.c.l.b16 %v647
        %v650 = vrot.slane %v649, 7
        %vm651 = vcmask 1041409
        %v652 = vsel %vm651, %v650, %v648
        %v653 = vpack.c.b16 %v652, %v652
        %v655 = vsel %vm556, %v653, 0
        %657 = vmatprep.subr.bf16.mxu0 0
        %658 = vmatpush1.bf16.msra.mxu0 0
        %659 = vmatprep.subr.bf16.mxu0 0
        %660 = vmatpush1.bf16.msra.mxu0 0
        %661 = vmatprep.subr.bf16.mxu0 0
        %662 = vmatpush1.bf16.msra.mxu0 0
        %663 = vmatprep.subr.bf16.mxu0 0
        %664 = vmatpush1.bf16.msra.mxu0 0
        %665 = vmatprep.subr.bf16.mxu0 0
        %666 = vmatpush1.bf16.msra.mxu0 0
        %667 = vmatprep.subr.bf16.mxu0 0
        %668 = vmatpush1.bf16.msra.mxu0 0
        %669 = vmatprep.subr.bf16.mxu0 0
        %670 = vmatpush1.bf16.msra.mxu0 0
        %671 = vmatprep.subr.bf16.mxu0 0
        %672 = vmatpush1.bf16.msra.mxu0 %v565
        %673 = vmatprep.subr.bf16.mxu0 0
        %674 = vmatpush2.bf16.msra.mxu0 0
        %675 = vmatprep.subr.bf16.mxu0 0
        %676 = vmatpush2.bf16.msra.mxu0 0
        %677 = vmatprep.subr.bf16.mxu0 0
        %678 = vmatpush2.bf16.msra.mxu0 0
        %679 = vmatprep.subr.bf16.mxu0 0
        %680 = vmatpush2.bf16.msra.mxu0 0
        %681 = vmatprep.subr.bf16.mxu0 0
        %682 = vmatpush2.bf16.msra.mxu0 0
        %683 = vmatprep.subr.bf16.mxu0 0
        %684 = vmatpush2.bf16.msra.mxu0 0
        %685 = vmatprep.subr.bf16.mxu0 0
        %686 = vmatpush2.bf16.msra.mxu0 0
        %687 = vmatprep.subr.bf16.mxu0 0
        %688 = vmatpush2.bf16.msra.mxu0 0
        %689 = vmatprep.mubr.bf16.mxu0 0
        %690 = vmatmul.mubr.bf16.gmra.mxu0 %v655
        %v691 = vpop.f32.mrf.mxu0
        %v692 = vadd.f32 %v544, %v691
        %v693 = vpop.f32.mrf.mxu0
        %v694 = vpop.f32.mrf.mxu0
        %v695 = vpop.f32.mrf.mxu0
        %696 = vdwg.mxu0
        %v697 = vpack.c.bf16 %v605, %v602
        %v698 = vpack.c.bf16 %v613, %v610
        %v701 = vunpack.c.l.s4 1966171168
        %v702 = vunpack.c.0.s8 %v701
        %v703 = vlaneseq
        %v704 = vshrl.u32 %v703, 7
        %v705 = vsub.s32 %v702, %v704
        %v706 = vrot.slane %v692, %v705
        %v707 = vcombine.high %v706, %v706
        %v709 = vunpack.c.l.s4 1966171168
        %v710 = vunpack.c.0.s8 %v709
        %v711 = vlaneseq
        %v712 = vshrl.u32 %v711, 7
        %v713 = vsub.s32 %v710, %v712
        %v714 = vrot.slane %v706, %v713
        %v716 = vunpack.c.l.s4 1966171168
        %v717 = vunpack.c.0.s8 %v716
        %v718 = vlaneseq
        %v719 = vshrl.u32 %v718, 7
        %v720 = vsub.s32 %v717, %v719
        %v721 = vrot.slane %v707, %v720
        %v722 = vlaneseq
        %v723 = vshrl.u32 %v722, 7
        %v724 = vsub.s32 0, %v723
        %v725 = vrot.slane %v714, %v724
        %v726 = vlaneseq
        %v727 = vshrl.u32 %v726, 7
        %v728 = vsub.s32 0, %v727
        %v729 = vrot.slane %v721, %v728
        %730 = vrot.lane.b32.xlu0 %v725, 4
        %v731 = vpop.permute.xlu0 %730
        %732 = vrot.lane.b32.xlu0 %v729, 4
        %v733 = vpop.permute.xlu0 %732
        %v736 = vmul.f32 %v602, %v731
        %v737 = vmul.f32 %v605, %v731
        %v738 = vmul.f32 %v610, %v733
        %v739 = vmul.f32 %v613, %v733
        %744 = vrot.lane.b32.xlu0 %v736, 124
        %v745 = vpop.permute.xlu0 %744
        %746 = vrot.lane.b32.xlu0 %v737, 124
        %v747 = vpop.permute.xlu0 %746
        %748 = vrot.lane.b32.xlu0 %v738, 124
        %v749 = vpop.permute.xlu0 %748
        %750 = vrot.lane.b32.xlu0 %v739, 124
        %v751 = vpop.permute.xlu0 %750
        %vm756 = vcmask 31744
        %v757 = vsel %vm756, %v745, 0.0
        %758 = vadd.xlane.f32.xlu0 %v757
        %v759 = vpop.xlane.xlu0 %758
        %v760 = vsel %vm756, %v747, 0.0
        %761 = vadd.xlane.f32.xlu0 %v760
        %v762 = vpop.xlane.xlu0 %761
        %v763 = vsel %vm756, %v749, 0.0
        %764 = vadd.xlane.f32.xlu0 %v763
        %v765 = vpop.xlane.xlu0 %764
        %v766 = vsel %vm756, %v751, 0.0
        %767 = vadd.xlane.f32.xlu0 %v766
        %v768 = vpop.xlane.xlu0 %767
        %v769 = vmul.f32 %v759, 0.5
        %v770 = vmul.f32 %v762, 0.5
        %v771 = vmul.f32 %v765, 0.5
        %v772 = vmul.f32 %v768, 0.5
        %773 = vrot.lane.b32.xlu0 %v725, 124
        %v774 = vpop.permute.xlu0 %773
        %775 = vrot.lane.b32.xlu0 %v729, 124
        %v776 = vpop.permute.xlu0 %775
        %v779 = vmul.f32 %v602, %v774
        %v780 = vmul.f32 %v605, %v774
        %v781 = vmul.f32 %v610, %v776
        %v782 = vmul.f32 %v613, %v776
        %v783 = vsel %vm756, %v779, 0.0
        %784 = vadd.xlane.f32.xlu0 %v783
        %v785 = vpop.xlane.xlu0 %784
        %v786 = vsel %vm756, %v780, 0.0
        %787 = vadd.xlane.f32.xlu0 %v786
        %v788 = vpop.xlane.xlu0 %787
        %v789 = vsel %vm756, %v781, 0.0
        %790 = vadd.xlane.f32.xlu0 %v789
        %v791 = vpop.xlane.xlu0 %790
        %v792 = vsel %vm756, %v782, 0.0
        %793 = vadd.xlane.f32.xlu0 %v792
        %v794 = vpop.xlane.xlu0 %793
        %v795 = vmul.f32 %v785, 0.5
        %v796 = vmul.f32 %v788, 0.5
        %v797 = vmul.f32 %v791, 0.5
        %v798 = vmul.f32 %v794, 0.5
        %799 = vrot.lane.b32.xlu0 %v692, 124
        %v800 = vpop.permute.xlu0 %799
        %v802 = vmul.f32 %v692, %v800
        %vm803 = vcmask 25600
        %v804 = vsel %vm803, %v802, 0.0
        %805 = vadd.xlane.f32.xlu0 %v804
        %v806 = vpop.xlane.xlu0 %805
        %v807 = vmul.f32 %v806, 0.5
        %809 = vrot.lane.b32.xlu0 %v697, 124
        %v810 = vpop.permute.xlu0 %809
        %v812 = vsel %vm756, %v810, 0
        %v815 = vsel %vm756, %v697, 0
        %817 = vmatprep.subr.bf16.mxu0 0
        %818 = vmatpush1.bf16.xpose.msra.mxu0 0
        %819 = vmatprep.subr.bf16.mxu0 0
        %820 = vmatpush1.bf16.xpose.msra.mxu0 0
        %821 = vmatprep.subr.bf16.mxu0 0
        %822 = vmatpush1.bf16.xpose.msra.mxu0 0
        %823 = vmatprep.subr.bf16.mxu0 0
        %824 = vmatpush1.bf16.xpose.msra.mxu0 0
        %825 = vmatprep.subr.bf16.mxu0 0
        %826 = vmatpush1.bf16.xpose.msra.mxu0 0
        %827 = vmatprep.subr.bf16.mxu0 0
        %828 = vmatpush1.bf16.xpose.msra.mxu0 0
        %829 = vmatprep.subr.bf16.mxu0 0
        %830 = vmatpush1.bf16.xpose.msra.mxu0 0
        %831 = vmatprep.subr.bf16.mxu0 0
        %832 = vmatpush1.bf16.xpose.msra.mxu0 %v815
        %833 = vmatprep.subr.bf16.mxu0 0
        %834 = vmatpush2.bf16.xpose.msra.mxu0 0
        %835 = vmatprep.subr.bf16.mxu0 0
        %836 = vmatpush2.bf16.xpose.msra.mxu0 0
        %837 = vmatprep.subr.bf16.mxu0 0
        %838 = vmatpush2.bf16.xpose.msra.mxu0 0
        %839 = vmatprep.subr.bf16.mxu0 0
        %840 = vmatpush2.bf16.xpose.msra.mxu0 0
        %841 = vmatprep.subr.bf16.mxu0 0
        %842 = vmatpush2.bf16.xpose.msra.mxu0 0
        %843 = vmatprep.subr.bf16.mxu0 0
        %844 = vmatpush2.bf16.xpose.msra.mxu0 0
        %845 = vmatprep.subr.bf16.mxu0 0
        %846 = vmatpush2.bf16.xpose.msra.mxu0 0
        %847 = vmatprep.subr.bf16.mxu0 0
        %848 = vmatpush2.bf16.xpose.msra.mxu0 0
        %849 = vmatprep.mubr.bf16.mxu0 0
        %850 = vmatmul.mubr.bf16.gmra.mxu0 %v812
        %v851 = vpop.f32.mrf.mxu0
        %v852 = vadd.f32 0.0, %v851
        %v853 = vpop.f32.mrf.mxu0
        %v854 = vpop.f32.mrf.mxu0
        %v855 = vadd.f32 0.0, %v854
        %v856 = vpop.f32.mrf.mxu0
        %857 = vdwg.mxu0
        %859 = vrot.lane.b32.xlu0 %v698, 124
        %v860 = vpop.permute.xlu0 %859
        %v862 = vsel %vm756, %v860, 0
        %v865 = vsel %vm756, %v698, 0
        %867 = vmatprep.subr.bf16.mxu0 0
        %868 = vmatpush1.bf16.xpose.msra.mxu0 0
        %869 = vmatprep.subr.bf16.mxu0 0
        %870 = vmatpush1.bf16.xpose.msra.mxu0 0
        %871 = vmatprep.subr.bf16.mxu0 0
        %872 = vmatpush1.bf16.xpose.msra.mxu0 0
        %873 = vmatprep.subr.bf16.mxu0 0
        %874 = vmatpush1.bf16.xpose.msra.mxu0 0
        %875 = vmatprep.subr.bf16.mxu0 0
        %876 = vmatpush1.bf16.xpose.msra.mxu0 0
        %877 = vmatprep.subr.bf16.mxu0 0
        %878 = vmatpush1.bf16.xpose.msra.mxu0 0
        %879 = vmatprep.subr.bf16.mxu0 0
        %880 = vmatpush1.bf16.xpose.msra.mxu0 0
        %881 = vmatprep.subr.bf16.mxu0 0
        %882 = vmatpush1.bf16.xpose.msra.mxu0 %v865
        %883 = vmatprep.subr.bf16.mxu0 0
        %884 = vmatpush2.bf16.xpose.msra.mxu0 0
        %885 = vmatprep.subr.bf16.mxu0 0
        %886 = vmatpush2.bf16.xpose.msra.mxu0 0
        %887 = vmatprep.subr.bf16.mxu0 0
        %888 = vmatpush2.bf16.xpose.msra.mxu0 0
        %889 = vmatprep.subr.bf16.mxu0 0
        %890 = vmatpush2.bf16.xpose.msra.mxu0 0
        %891 = vmatprep.subr.bf16.mxu0 0
        %892 = vmatpush2.bf16.xpose.msra.mxu0 0
        %893 = vmatprep.subr.bf16.mxu0 0
        %894 = vmatpush2.bf16.xpose.msra.mxu0 0
        %895 = vmatprep.subr.bf16.mxu0 0
        %896 = vmatpush2.bf16.xpose.msra.mxu0 0
        %897 = vmatprep.subr.bf16.mxu0 0
        %898 = vmatpush2.bf16.xpose.msra.mxu0 0
        %899 = vmatprep.mubr.bf16.mxu0 0
        %900 = vmatmul.mubr.bf16.gmra.mxu0 %v862
        %v901 = vpop.f32.mrf.mxu0
        %v902 = vadd.f32 0.0, %v901
        %v903 = vpop.f32.mrf.mxu0
        %v904 = vpop.f32.mrf.mxu0
        %v905 = vadd.f32 0.0, %v904
        %v906 = vpop.f32.mrf.mxu0
        %907 = vdwg.mxu0
        %v908 = vmul.f32 %v852, 0.5
        %v909 = vmul.f32 %v855, 0.5
        %v910 = vmul.f32 %v902, 0.5
        %v911 = vmul.f32 %v905, 0.5
        %vm912 = vcmask 130048
        %v913 = vsel %vm912, %v908, -inf
        %914 = vmax.xlane.f32.xlu0 %v913
        %v915 = vpop.xlane.xlu0 %914
        %v916 = vsel %vm912, %v909, -inf
        %917 = vmax.xlane.f32.xlu0 %v916
        %v918 = vpop.xlane.xlu0 %917
        %v919 = vsel %vm912, %v910, -inf
        %920 = vmax.xlane.f32.xlu0 %v919
        %v921 = vpop.xlane.xlu0 %920
        %v922 = vsel %vm912, %v911, -inf
        %923 = vmax.xlane.f32.xlu0 %v922
        %v924 = vpop.xlane.xlu0 %923
        %v925 = vmax.f32 %v915, %v769
        %v926 = vmax.f32 %v918, %v770
        %v927 = vmax.f32 %v921, %v771
        %v928 = vmax.f32 %v924, %v772
        %v929 = vsub.f32 %v769, %v925
        %v930 = vsub.f32 %v770, %v926
        %v931 = vsub.f32 %v771, %v927
        %v932 = vsub.f32 %v772, %v928
        %v933 = vmul.f32 %v929, 1.442695
        %v934 = vpow.pop %v933
        %v935 = vmul.f32 %v930, 1.442695
        %v936 = vpow.pop %v935
        %v937 = vmul.f32 %v931, 1.442695
        %v938 = vpow.pop %v937
        %v939 = vmul.f32 %v932, 1.442695
        %v940 = vpow.pop %v939
        %v941 = vsub.f32 %v908, %v925
        %v942 = vsub.f32 %v909, %v926
        %v943 = vsub.f32 %v910, %v927
        %v944 = vsub.f32 %v911, %v928
        %v945 = vmul.f32 %v941, 1.442695
        %v946 = vpow.pop %v945
        %v947 = vmul.f32 %v942, 1.442695
        %v948 = vpow.pop %v947
        %v949 = vmul.f32 %v943, 1.442695
        %v950 = vpow.pop %v949
        %v951 = vmul.f32 %v944, 1.442695
        %v952 = vpow.pop %v951
        %v953 = vsel %vm912, %v946, 0.0
        %954 = vadd.xlane.f32.xlu0 %v953
        %v955 = vpop.xlane.xlu0 %954
        %v956 = vsel %vm912, %v948, 0.0
        %957 = vadd.xlane.f32.xlu0 %v956
        %v958 = vpop.xlane.xlu0 %957
        %v959 = vsel %vm912, %v950, 0.0
        %960 = vadd.xlane.f32.xlu0 %v959
        %v961 = vpop.xlane.xlu0 %960
        %v962 = vsel %vm912, %v952, 0.0
        %963 = vadd.xlane.f32.xlu0 %v962
        %v964 = vpop.xlane.xlu0 %963
        %v965 = vadd.f32 %v934, %v955
        %v966 = vadd.f32 %v936, %v958
        %v967 = vadd.f32 %v938, %v961
        %v968 = vadd.f32 %v940, %v964
        %v969 = vrcp.pop %v965
        %v970 = vrcp.pop %v966
        %v971 = vrcp.pop %v967
        %v972 = vrcp.pop %v968
        %v973 = vmul.f32 %v934, %v969
        %v974 = vmul.f32 %v936, %v970
        %v975 = vmul.f32 %v938, %v971
        %v976 = vmul.f32 %v940, %v972
        %v979 = vlaneseq
        %v980 = vand.u32 %v979, 127
        %v981 = vlaneseq
        %v982 = vshrl.u32 %v981, 7
        %v983 = vsub.s32 %v980, %v982
        %v984 = vrot.slane %v973, %v983
        %v985 = vadd.s32 %v980, 4294967288
        %v986 = vlaneseq
        %v987 = vshrl.u32 %v986, 7
        %v988 = vsub.s32 %v985, %v987
        %v989 = vrot.slane %v974, %v988
        %vm990 = vcmask 130112
        %v991 = vsel %vm990, %v989, %v984
        %994 = vrot.lane.b32.xlu0 %v602, 120
        %v995 = vpop.permute.xlu0 %994
        %996 = vrot.lane.b32.xlu0 %v605, 120
        %v997 = vpop.permute.xlu0 %996
        %v1000 = vsel %vm912, %v991, 0
        %1002 = vmatprep.subr.mxu0 0.0
        %1003 = vmatpush1.msra.mxu0 0.0
        %1004 = vmatprep.subr.mxu0 0.0
        %1005 = vmatpush1.msra.mxu0 0.0
        %1006 = vmatprep.subr.mxu0 0.0
        %1007 = vmatpush1.msra.mxu0 0.0
        %1008 = vmatprep.subr.mxu0 0.0
        %1009 = vmatpush1.msra.mxu0 0.0
        %1010 = vmatprep.subr.mxu0 0.0
        %1011 = vmatpush1.msra.mxu0 0.0
        %1012 = vmatprep.subr.mxu0 0.0
        %1013 = vmatpush1.msra.mxu0 0.0
        %1014 = vmatprep.subr.mxu0 0.0
        %1015 = vmatpush1.msra.mxu0 0.0
        %1016 = vmatprep.subr.mxu0 0.0
        %1017 = vmatpush1.msra.mxu0 0.0
        %1018 = vmatprep.subr.mxu0 0.0
        %1019 = vmatpush1.msra.mxu0 0.0
        %1020 = vmatprep.subr.mxu0 0.0
        %1021 = vmatpush1.msra.mxu0 0.0
        %1022 = vmatprep.subr.mxu0 0.0
        %1023 = vmatpush1.msra.mxu0 0.0
        %1024 = vmatprep.subr.mxu0 0.0
        %1025 = vmatpush1.msra.mxu0 0.0
        %1026 = vmatprep.subr.mxu0 0.0
        %1027 = vmatpush1.msra.mxu0 0.0
        %1028 = vmatprep.subr.mxu0 0.0
        %1029 = vmatpush1.msra.mxu0 0.0
        %1030 = vmatprep.subr.mxu0 0.0
        %1031 = vmatpush1.msra.mxu0 %v997
        %1032 = vmatprep.subr.mxu0 0.0
        %1033 = vmatpush1.msra.mxu0 %v995
        %1034 = vmatprep.subr.mxu0 0.0
        %1035 = vmatpush2.msra.mxu0 0.0
        %1036 = vmatprep.subr.mxu0 0.0
        %1037 = vmatpush2.msra.mxu0 0.0
        %1038 = vmatprep.subr.mxu0 0.0
        %1039 = vmatpush2.msra.mxu0 0.0
        %1040 = vmatprep.subr.mxu0 0.0
        %1041 = vmatpush2.msra.mxu0 0.0
        %1042 = vmatprep.subr.mxu0 0.0
        %1043 = vmatpush2.msra.mxu0 0.0
        %1044 = vmatprep.subr.mxu0 0.0
        %1045 = vmatpush2.msra.mxu0 0.0
        %1046 = vmatprep.subr.mxu0 0.0
        %1047 = vmatpush2.msra.mxu0 0.0
        %1048 = vmatprep.subr.mxu0 0.0
        %1049 = vmatpush2.msra.mxu0 0.0
        %1050 = vmatprep.subr.mxu0 0.0
        %1051 = vmatpush2.msra.mxu0 0.0
        %1052 = vmatprep.subr.mxu0 0.0
        %1053 = vmatpush2.msra.mxu0 0.0
        %1054 = vmatprep.subr.mxu0 0.0
        %1055 = vmatpush2.msra.mxu0 0.0
        %1056 = vmatprep.subr.mxu0 0.0
        %1057 = vmatpush2.msra.mxu0 0.0
        %1058 = vmatprep.subr.mxu0 0.0
        %1059 = vmatpush2.msra.mxu0 0.0
        %1060 = vmatprep.subr.mxu0 0.0
        %1061 = vmatpush2.msra.mxu0 0.0
        %1062 = vmatprep.subr.mxu0 0.0
        %1063 = vmatpush2.msra.mxu0 0.0
        %1064 = vmatprep.subr.mxu0 0.0
        %1065 = vmatpush2.msra.mxu0 0.0
        %1066 = vmatprep.mubr.f32.mxu0 0.0
        %1067 = vmatmul.mubr.f32.gmra.mxu0 %v1000
        %v1068 = vpop.f32.mrf.mxu0
        %v1069 = vadd.f32 0.0, %v1068
        %v1070 = vpop.f32.mrf.mxu0
        %1071 = vdwg.mxu0
        %v1074 = vlaneseq
        %v1075 = vshrl.u32 %v1074, 7
        %v1076 = vsub.s32 %v980, %v1075
        %v1077 = vrot.slane %v975, %v1076
        %v1078 = vlaneseq
        %v1079 = vshrl.u32 %v1078, 7
        %v1080 = vsub.s32 %v985, %v1079
        %v1081 = vrot.slane %v976, %v1080
        %v1082 = vsel %vm990, %v1081, %v1077
        %1085 = vrot.lane.b32.xlu0 %v610, 120
        %v1086 = vpop.permute.xlu0 %1085
        %1087 = vrot.lane.b32.xlu0 %v613, 120
        %v1088 = vpop.permute.xlu0 %1087
        %v1091 = vsel %vm912, %v1082, 0
        %1093 = vmatprep.subr.mxu0 0.0
        %1094 = vmatpush1.msra.mxu0 0.0
        %1095 = vmatprep.subr.mxu0 0.0
        %1096 = vmatpush1.msra.mxu0 0.0
        %1097 = vmatprep.subr.mxu0 0.0
        %1098 = vmatpush1.msra.mxu0 0.0
        %1099 = vmatprep.subr.mxu0 0.0
        %1100 = vmatpush1.msra.mxu0 0.0
        %1101 = vmatprep.subr.mxu0 0.0
        %1102 = vmatpush1.msra.mxu0 0.0
        %1103 = vmatprep.subr.mxu0 0.0
        %1104 = vmatpush1.msra.mxu0 0.0
        %1105 = vmatprep.subr.mxu0 0.0
        %1106 = vmatpush1.msra.mxu0 0.0
        %1107 = vmatprep.subr.mxu0 0.0
        %1108 = vmatpush1.msra.mxu0 0.0
        %1109 = vmatprep.subr.mxu0 0.0
        %1110 = vmatpush1.msra.mxu0 0.0
        %1111 = vmatprep.subr.mxu0 0.0
        %1112 = vmatpush1.msra.mxu0 0.0
        %1113 = vmatprep.subr.mxu0 0.0
        %1114 = vmatpush1.msra.mxu0 0.0
        %1115 = vmatprep.subr.mxu0 0.0
        %1116 = vmatpush1.msra.mxu0 0.0
        %1117 = vmatprep.subr.mxu0 0.0
        %1118 = vmatpush1.msra.mxu0 0.0
        %1119 = vmatprep.subr.mxu0 0.0
        %1120 = vmatpush1.msra.mxu0 0.0
        %1121 = vmatprep.subr.mxu0 0.0
        %1122 = vmatpush1.msra.mxu0 %v1088
        %1123 = vmatprep.subr.mxu0 0.0
        %1124 = vmatpush1.msra.mxu0 %v1086
        %1125 = vmatprep.subr.mxu0 0.0
        %1126 = vmatpush2.msra.mxu0 0.0
        %1127 = vmatprep.subr.mxu0 0.0
        %1128 = vmatpush2.msra.mxu0 0.0
        %1129 = vmatprep.subr.mxu0 0.0
        %1130 = vmatpush2.msra.mxu0 0.0
        %1131 = vmatprep.subr.mxu0 0.0
        %1132 = vmatpush2.msra.mxu0 0.0
        %1133 = vmatprep.subr.mxu0 0.0
        %1134 = vmatpush2.msra.mxu0 0.0
        %1135 = vmatprep.subr.mxu0 0.0
        %1136 = vmatpush2.msra.mxu0 0.0
        %1137 = vmatprep.subr.mxu0 0.0
        %1138 = vmatpush2.msra.mxu0 0.0
        %1139 = vmatprep.subr.mxu0 0.0
        %1140 = vmatpush2.msra.mxu0 0.0
        %1141 = vmatprep.subr.mxu0 0.0
        %1142 = vmatpush2.msra.mxu0 0.0
        %1143 = vmatprep.subr.mxu0 0.0
        %1144 = vmatpush2.msra.mxu0 0.0
        %1145 = vmatprep.subr.mxu0 0.0
        %1146 = vmatpush2.msra.mxu0 0.0
        %1147 = vmatprep.subr.mxu0 0.0
        %1148 = vmatpush2.msra.mxu0 0.0
        %1149 = vmatprep.subr.mxu0 0.0
        %1150 = vmatpush2.msra.mxu0 0.0
        %1151 = vmatprep.subr.mxu0 0.0
        %1152 = vmatpush2.msra.mxu0 0.0
        %1153 = vmatprep.subr.mxu0 0.0
        %1154 = vmatpush2.msra.mxu0 0.0
        %1155 = vmatprep.subr.mxu0 0.0
        %1156 = vmatpush2.msra.mxu0 0.0
        %1157 = vmatprep.mubr.f32.mxu0 0.0
        %1158 = vmatmul.mubr.f32.gmra.mxu0 %v1091
        %v1159 = vpop.f32.mrf.mxu0
        %v1160 = vadd.f32 0.0, %v1159
        %v1161 = vpop.f32.mrf.mxu0
        %1162 = vdwg.mxu0
        %v1167 = vlaneseq
        %v1168 = vshrl.u32 %v1167, 7
        %v1169 = vsub.s32 %v980, %v1168
        %v1170 = vrot.slane %v795, %v1169
        %v1171 = vlaneseq
        %v1172 = vshrl.u32 %v1171, 7
        %v1173 = vsub.s32 %v985, %v1172
        %v1174 = vrot.slane %v796, %v1173
        %v1175 = vsel %vm990, %v1174, %v1170
        %v1176 = vlaneseq
        %v1177 = vshrl.u32 %v1176, 7
        %v1178 = vsub.s32 %v980, %v1177
        %v1179 = vrot.slane %v797, %v1178
        %v1180 = vlaneseq
        %v1181 = vshrl.u32 %v1180, 7
        %v1182 = vsub.s32 %v985, %v1181
        %v1183 = vrot.slane %v798, %v1182
        %v1184 = vsel %vm990, %v1183, %v1179
        %v1185 = vsel %vm651, %v1184, %v1175
        %vm1187 = vcmask 123904
        %v1188 = vsel %vm1187, %v1185, -inf
        %1189 = vmax.xlane.f32.xlu0 %v1188
        %v1190 = vpop.xlane.xlu0 %1189
        %v1191 = vmax.f32 %v1190, %v807
        %v1192 = vsub.f32 %v807, %v1191
        %v1193 = vmul.f32 %v1192, 1.442695
        %v1194 = vpow.pop %v1193
        %v1196 = vlaneseq
        %v1197 = vshrl.u32 %v1196, 7
        %v1198 = vsub.s32 0, %v1197
        %v1199 = vrot.slane %v1191, %v1198
        %v1200 = vlaneseq
        %v1201 = vshrl.u32 %v1200, 7
        %v1202 = vsub.s32 1, %v1201
        %v1203 = vrot.slane %v1191, %v1202
        %v1206 = vsub.f32 %v795, %v1199
        %v1207 = vsub.f32 %v796, %v1199
        %v1208 = vsub.f32 %v797, %v1203
        %v1209 = vsub.f32 %v798, %v1203
        %v1210 = vmul.f32 %v1206, 1.442695
        %v1211 = vpow.pop %v1210
        %v1212 = vmul.f32 %v1207, 1.442695
        %v1213 = vpow.pop %v1212
        %v1214 = vmul.f32 %v1208, 1.442695
        %v1215 = vpow.pop %v1214
        %v1216 = vmul.f32 %v1209, 1.442695
        %v1217 = vpow.pop %v1216
        %1222 = vset.pattern.permute.xlu0 0
        %1223 = vperm.xlu0 %1222, %v1211
        %v1224 = vpop.permute.xlu0 %1223
        %1225 = vset.pattern.permute.xlu0 0
        %1226 = vperm.xlu0 %1225, %v1213
        %v1227 = vpop.permute.xlu0 %1226
        %1228 = vset.pattern.permute.xlu0 0
        %1229 = vperm.xlu0 %1228, %v1215
        %v1230 = vpop.permute.xlu0 %1229
        %1231 = vset.pattern.permute.xlu0 0
        %1232 = vperm.xlu0 %1231, %v1217
        %v1233 = vpop.permute.xlu0 %1232
        %v1234 = vlaneseq
        %v1235 = vshrl.u32 %v1234, 7
        %v1236 = vsub.s32 %v980, %v1235
        %v1237 = vrot.slane %v1224, %v1236
        %v1238 = vlaneseq
        %v1239 = vshrl.u32 %v1238, 7
        %v1240 = vsub.s32 %v985, %v1239
        %v1241 = vrot.slane %v1227, %v1240
        %v1242 = vsel %vm990, %v1241, %v1237
        %v1243 = vlaneseq
        %v1244 = vshrl.u32 %v1243, 7
        %v1245 = vsub.s32 %v980, %v1244
        %v1246 = vrot.slane %v1230, %v1245
        %v1247 = vlaneseq
        %v1248 = vshrl.u32 %v1247, 7
        %v1249 = vsub.s32 %v985, %v1248
        %v1250 = vrot.slane %v1233, %v1249
        %v1251 = vsel %vm990, %v1250, %v1246
        %v1252 = vsel %vm651, %v1251, %v1242
        %v1254 = vsel %vm1187, %v1252, 0.0
        %1255 = vadd.xlane.f32.xlu0 %v1254
        %v1256 = vpop.xlane.xlu0 %1255
        %v1257 = vadd.f32 %v1194, %v1256
        %v1258 = vrcp.pop %v1257
        %v1259 = vmul.f32 %v1194, %v1258
        %v1260 = vmul.f32 %v692, %v1259
        %v1262 = vrot.slane %v1260, 1
        %1263 = vrot.lane.b32.xlu0 %v1260, 120
        %v1264 = vpop.permute.xlu0 %1263
        %1265 = vrot.lane.b32.xlu0 %v1262, 120
        %v1266 = vpop.permute.xlu0 %1265
        %v1269 = vadd.f32 %v1069, %v1264
        %v1270 = vadd.f32 %v1160, %v1266
        %v1271 = vld [vmem:[#allocation4] sm:$0x3]
        %v1272 = vld [vmem:[%s363] sm:$0x3]
        %v1273 = vunpack.c.l.bf16 %v1272
        %v1276 = vrot.slane %v1270, 7
        %v1277 = vsel %vm651, %v1276, %v1269
        %v1278 = vsel %vm756, %v1277, 0
        %v1281 = vsel %vm563, %v1273, 0
        %1283 = vmatprep.subr.mxu0 0.0
        %1284 = vmatpush1.msra.mxu0 0.0
        %1285 = vmatprep.subr.mxu0 0.0
        %1286 = vmatpush1.msra.mxu0 0.0
        %1287 = vmatprep.subr.mxu0 0.0
        %1288 = vmatpush1.msra.mxu0 0.0
        %1289 = vmatprep.subr.mxu0 0.0
        %1290 = vmatpush1.msra.mxu0 0.0
        %1291 = vmatprep.subr.mxu0 0.0
        %1292 = vmatpush1.msra.mxu0 0.0
        %1293 = vmatprep.subr.mxu0 0.0
        %1294 = vmatpush1.msra.mxu0 0.0
        %1295 = vmatprep.subr.mxu0 0.0
        %1296 = vmatpush1.msra.mxu0 0.0
        %1297 = vmatprep.subr.mxu0 0.0
        %1298 = vmatpush1.msra.mxu0 0.0
        %1299 = vmatprep.subr.mxu0 0.0
        %1300 = vmatpush1.msra.mxu0 0.0
        %1301 = vmatprep.subr.mxu0 0.0
        %1302 = vmatpush1.msra.mxu0 0.0
        %1303 = vmatprep.subr.mxu0 0.0
        %1304 = vmatpush1.msra.mxu0 0.0
        %1305 = vmatprep.subr.mxu0 0.0
        %1306 = vmatpush1.msra.mxu0 0.0
        %1307 = vmatprep.subr.mxu0 0.0
        %1308 = vmatpush1.msra.mxu0 0.0
        %1309 = vmatprep.subr.mxu0 0.0
        %1310 = vmatpush1.msra.mxu0 0.0
        %1311 = vmatprep.subr.mxu0 0.0
        %1312 = vmatpush1.msra.mxu0 0.0
        %1313 = vmatprep.subr.mxu0 0.0
        %1314 = vmatpush1.msra.mxu0 %v1281
        %1315 = vmatprep.subr.mxu0 0.0
        %1316 = vmatpush2.msra.mxu0 0.0
        %1317 = vmatprep.subr.mxu0 0.0
        %1318 = vmatpush2.msra.mxu0 0.0
        %1319 = vmatprep.subr.mxu0 0.0
        %1320 = vmatpush2.msra.mxu0 0.0
        %1321 = vmatprep.subr.mxu0 0.0
        %1322 = vmatpush2.msra.mxu0 0.0
        %1323 = vmatprep.subr.mxu0 0.0
        %1324 = vmatpush2.msra.mxu0 0.0
        %1325 = vmatprep.subr.mxu0 0.0
        %1326 = vmatpush2.msra.mxu0 0.0
        %1327 = vmatprep.subr.mxu0 0.0
        %1328 = vmatpush2.msra.mxu0 0.0
        %1329 = vmatprep.subr.mxu0 0.0
        %1330 = vmatpush2.msra.mxu0 0.0
        %1331 = vmatprep.subr.mxu0 0.0
        %1332 = vmatpush2.msra.mxu0 0.0
        %1333 = vmatprep.subr.mxu0 0.0
        %1334 = vmatpush2.msra.mxu0 0.0
        %1335 = vmatprep.subr.mxu0 0.0
        %1336 = vmatpush2.msra.mxu0 0.0
        %1337 = vmatprep.subr.mxu0 0.0
        %1338 = vmatpush2.msra.mxu0 0.0
        %1339 = vmatprep.subr.mxu0 0.0
        %1340 = vmatpush2.msra.mxu0 0.0
        %1341 = vmatprep.subr.mxu0 0.0
        %1342 = vmatpush2.msra.mxu0 0.0
        %1343 = vmatprep.subr.mxu0 0.0
        %1344 = vmatpush2.msra.mxu0 0.0
        %1345 = vmatprep.subr.mxu0 0.0
        %1346 = vmatpush2.msra.mxu0 0.0
        %1347 = vmatprep.mubr.f32.mxu0 0.0
        %1348 = vmatmul.mubr.f32.gmra.mxu0 %v1278
        %v1349 = vpop.f32.mrf.mxu0
        %v1350 = vadd.f32 0.0, %v1349
        %v1351 = vpop.f32.mrf.mxu0
        %1352 = vdwg.mxu0
        %v1353 = vadd.f32 %v1271, %v1350
        %vm1354 = vcmask 58368
        %1355 = vst.msk [vmem:[#allocation4] sm:$0x3] %vm1354, %v1353
        %p1356 = scmp.eq.s32.totalorder %s26, 1
        // Predicated region
        $region65: #{tpu_custom_call.1} parent=47 // pred_check
          %p1357 = pneg %p1356
        $region66: #{tpu_custom_call.1} parent=47 // pred_check_branch
          %1359 = sbr.rel (%p1357) target = $region68
        $region67: #{tpu_custom_call.1} parent=47 // pred_region
          %v1360 = vld [vmem:[#allocation4] sm:$0x3]
          %v1361 = vld [vmem:[%s6] sm:$0x1]
          %v1363 = vlaneseq
          %v1364 = vshrl.u32 %v1363, 7
          %v1365 = vsub.s32 0, %v1364
          %v1366 = vrot.slane %v1361, %v1365
          %v1368 = vadd.f32 %v1360, %v1366
          %1369 = vst.msk [vmem:[#allocation11] sm:$0x3] %vm1354, %v1368
        $region68: #{tpu_custom_call.1} parent=47 // pred_fallthru
          _
        // Predicated region
        $region69: #{tpu_custom_call.1} parent=47 // pred_check
          %p1370 = pneg %p218
        $region70: #{tpu_custom_call.1} parent=47 // pred_check_branch
          %1372 = sbr.rel (%p1370) target = $region72
        $region71: #{tpu_custom_call.1} parent=47 // pred_region
          %s1374 = ssub.s32 32, 32
          %1375 = vsyncadd [#allocation7], %s1374
          %s1376 = smul.addr %s25, 32
          %s1377 = scalar_lea.hbm %s7, %s1376
          %s1379 = sshll.u32 [#allocation11], 4
          %s1380 = int_to_ptr.vmem [resolvable:$true] %s1379
          %1382 = dma.vmem_to_hbm [thread:$0]  %s1380, 32, %s1377, [#allocation7]
        $region72: #{tpu_custom_call.1} parent=47 // pred_fallthru
          _
        // Predicated region
        $region73: #{tpu_custom_call.1} parent=47 // pred_check
          %p1383 = pneg %p218
        $region74: #{tpu_custom_call.1} parent=47 // pred_check_branch
          %1385 = sbr.rel (%p1383) target = $region76
        $region75: #{tpu_custom_call.1} parent=47 // pred_region
          %1386 = dma.done [#allocation7], 32
        $region76: #{tpu_custom_call.1} parent=47 // pred_fallthru
          _
      $region48: #{tpu_custom_call.1} parent=5 // pred_fallthru
        _
      %p1387 = scmp.le.s32.totalorder 2, %s16
      // Predicated region
      $region77: #{tpu_custom_call.1} parent=5 // pred_check
        %p1388 = pneg %p1387
      $region78: #{tpu_custom_call.1} parent=5 // pred_check_branch
        %1390 = sbr.rel (%p1388) target = $region80
      $region79: #{tpu_custom_call.1} parent=5 // pred_region
        %s1391 = ssub.s32 %s16, 2
      $region80: #{tpu_custom_call.1} parent=5 // pred_fallthru
        _
    $region6: #{tpu_custom_call.1} parent=1 // loop_footer
      %s20 = sadd.s32 1, %s16
    $region7: #{tpu_custom_call.1} parent=1 // loop_footer_branch
      %15 = sbr.rel target = $region3
    $region8: #{tpu_custom_call.1} parent=1 // loop_exit
      _
    %1392 = vsyncpa [#allocation6], 1
    %s1393 = scalar_lea.sflag [#allocation6], 1
    %1394 = vsyncpa %s1393, 1
    %1395 = vsyncpa [#allocation9], 1
    %1396 = vsyncpa [#allocation7], 1
    %s1397 = scalar_lea.sflag [#allocation7], 1
    %1398 = vsyncpa %s1397, 1

</llo_original>
